<compile_context>
chip_gen: v5e
topology: v5e:2x2
jax: 0.10.0
libtpu: 0.0.40
codegen_flags: <defaults>
</compile_context>

<pallas_src>
import functools

import jax
import jax.numpy as jnp
from jax.experimental import pallas as pl
from jax.experimental.pallas import tpu as pltpu

_LANE = 128
_VMEM_LIMIT = 64 * 1024 * 1024


def _rup(x, m):
    return ((x + m - 1) // m) * m


# ---------------------------------------------------------------------------
# Kernel 1: 3x3 conv (9 accumulated MXU dots) + per-tile BN partial sums.
# ---------------------------------------------------------------------------
def _conv_tap_kernel(zp_ref, w_ref, y_ref, psum_ref, psumsq_ref, *, th):
    """One (batch n, row-tile j) grid step.

    zp_ref    : (1, H+2, W+2, Cin)  zero-padded image (block revisited over j)
    w_ref     : (9*Cin, Cout)       flattened conv weight, tap-major rows
    y_ref     : (1, th, W, Cout)    pre-BN conv output tile
    psum_ref  : (1, 1, 8, Cout)     per-tile sum(y)   (broadcast on sublanes)
    psumsq_ref: (1, 1, 8, Cout)     per-tile sum(y*y)
    """
    _, hp2, wp2, cin = zp_ref.shape
    w = wp2 - 2
    cout = y_ref.shape[-1]

    j = pl.program_id(1)
    r0 = pl.multiple_of(j * th, th)
    # Row tile with a 1-row halo on each side (padded coordinates).
    xt = zp_ref[:, pl.ds(r0, th + 2), :, :]            # (1, th+2, W+2, Cin)

    acc = jnp.zeros((th * w, cout), jnp.float32)
    for dy in range(3):                                 # 9 accumulated taps
        for dx in range(3):
            t = dy * 3 + dx
            xs = xt[:, dy:dy + th, dx:dx + w, :].reshape(th * w, cin)
            acc = acc + jnp.dot(xs, w_ref[t * cin:(t + 1) * cin, :],
                                preferred_element_type=jnp.float32)

    y_ref[...] = acc.reshape(1, th, w, cout)

    # Per-tile BN partial statistics (reduced across tiles in plain JAX).
    s = jnp.sum(acc, axis=0).reshape(1, 1, 1, cout)
    s2 = jnp.sum(acc * acc, axis=0).reshape(1, 1, 1, cout)
    psum_ref[...] = jnp.broadcast_to(s, psum_ref.shape)
    psumsq_ref[...] = jnp.broadcast_to(s2, psumsq_ref.shape)


def conv3x3_partial(zpad, w_flat, th):
    """3x3 'same' conv on a zero-padded NHWC input; also emits BN partial sums."""
    n, hp2, wp2, cin = zpad.shape
    h, w = hp2 - 2, wp2 - 2
    cout = w_flat.shape[1]
    n_tiles = h // th
    kernel = functools.partial(_conv_tap_kernel, th=th)
    return pl.pallas_call(
        kernel,
        out_shape=(
            jax.ShapeDtypeStruct((n, h, w, cout), jnp.float32),
            jax.ShapeDtypeStruct((n, n_tiles, 8, cout), jnp.float32),
            jax.ShapeDtypeStruct((n, n_tiles, 8, cout), jnp.float32),
        ),
        grid_spec=pltpu.PrefetchScalarGridSpec(
            num_scalar_prefetch=0,
            grid=(n, n_tiles),
            in_specs=[
                pl.BlockSpec((1, hp2, wp2, cin), lambda i, j: (i, 0, 0, 0)),
                pl.BlockSpec((9 * cin, cout), lambda i, j: (0, 0)),
            ],
            out_specs=(
                pl.BlockSpec((1, th, w, cout), lambda i, j: (i, j, 0, 0)),
                pl.BlockSpec((1, 1, 8, cout), lambda i, j: (i, j, 0, 0)),
                pl.BlockSpec((1, 1, 8, cout), lambda i, j: (i, j, 0, 0)),
            ),
        ),
        compiler_params=pltpu.CompilerParams(
            dimension_semantics=("parallel", "parallel"),
            vmem_limit_bytes=_VMEM_LIMIT),
    )(zpad, w_flat)


# ---------------------------------------------------------------------------
# Kernel 2: apply BN affine + ReLU; optionally write the spatially padded
# activation directly (fused pad => no jnp.pad round trip between stages).
# ---------------------------------------------------------------------------
def _bn_relu_kernel(y_ref, sc_ref, sh_ref, o_ref, *, pad_output):
    _, h, w, _ = y_ref.shape
    z = jnp.maximum(y_ref[...] * sc_ref[...] + sh_ref[...], 0.0)
    if pad_output:
        o_ref[...] = jnp.zeros(o_ref.shape, o_ref.dtype)
        o_ref[:, 1:h + 1, 1:w + 1, :] = z
    else:
        o_ref[...] = z


def bn_relu(y, scale, shift, *, pad_output):
    n, h, w, c = y.shape
    if pad_output:
        oshape, oblock = (n, h + 2, w + 2, c), (1, h + 2, w + 2, c)
    else:
        oshape, oblock = (n, h, w, c), (1, h, w, c)
    kernel = functools.partial(_bn_relu_kernel, pad_output=pad_output)
    return pl.pallas_call(
        kernel,
        out_shape=jax.ShapeDtypeStruct(oshape, jnp.float32),
        grid_spec=pltpu.PrefetchScalarGridSpec(
            num_scalar_prefetch=0,
            grid=(n,),
            in_specs=[
                pl.BlockSpec((1, h, w, c), lambda i: (i, 0, 0, 0)),
                pl.BlockSpec((1, c), lambda i: (0, 0)),
                pl.BlockSpec((1, c), lambda i: (0, 0)),
            ],
            out_specs=pl.BlockSpec(oblock, lambda i: (i, 0, 0, 0)),
        ),
        compiler_params=pltpu.CompilerParams(
            dimension_semantics=("parallel",),
            vmem_limit_bytes=_VMEM_LIMIT),
    )(y, scale, shift)


# ---------------------------------------------------------------------------
# Plain-JAX glue (tiny per-channel vectors / parameter packing only).
# ---------------------------------------------------------------------------
def _finalize_stats(psum, psumsq, gamma_p, beta_p, count, eps):
    s = jnp.sum(psum[:, :, 0, :], axis=(0, 1))
    s2 = jnp.sum(psumsq[:, :, 0, :], axis=(0, 1))
    mean = s / count
    var = jnp.maximum(s2 / count - mean * mean, 0.0)   # biased (training) var
    scale = gamma_p * jax.lax.rsqrt(var + eps)
    shift = beta_p - mean * scale
    return scale.reshape(1, -1), shift.reshape(1, -1)


def _prep_weight(w_hwio, cin_p, cout_p):
    kh, kw, cin, cout = w_hwio.shape
    wp = jnp.zeros((kh, kw, cin_p, cout_p), jnp.float32)
    wp = wp.at[:, :, :cin, :cout].set(w_hwio.astype(jnp.float32))
    return wp.reshape(kh * kw * cin_p, cout_p)


def _pad_vec(v, cp):
    return jnp.zeros((cp,), jnp.float32).at[:v.shape[0]].set(v.astype(jnp.float32))


def _pick_row_tile(h):
    return 8 if (h % 8 == 0 and h > 8) else h


def encoding_block_forward(x_nchw, params, eps=1e-5):
    """encoding_block.forward — input/output in PyTorch NCHW convention."""
    n, cin, h, w = x_nchw.shape
    cout = params["gamma1"].shape[0]
    cin_p, cout_p = _rup(cin, _LANE), _rup(cout, _LANE)
    th = _pick_row_tile(h)
    count = n * h * w

    # NCHW -> NHWC, channel pad to lane width, spatial pad for stage-1 conv.
    x = jnp.transpose(x_nchw, (0, 2, 3, 1)).astype(jnp.float32)
    x = jnp.pad(x, ((0, 0), (1, 1), (1, 1), (0, cin_p - cin)))

    w1 = _prep_weight(params["w1"], cin_p, cout_p)
    w2 = _prep_weight(params["w2"], cout_p, cout_p)
    g1, b1 = _pad_vec(params["gamma1"], cout_p), _pad_vec(params["beta1"], cout_p)
    g2, b2 = _pad_vec(params["gamma2"], cout_p), _pad_vec(params["beta2"], cout_p)

    # Stage 1: conv -> (stats) -> BN+ReLU (padded output feeds stage 2 directly)
    y1, ps1, pq1 = conv3x3_partial(x, w1, th)
    sc1, sh1 = _finalize_stats(ps1, pq1, g1, b1, count, eps)
    z1 = bn_relu(y1, sc1, sh1, pad_output=True)

    # Stage 2: conv -> (stats) -> BN+ReLU (unpadded output)
    y2, ps2, pq2 = conv3x3_partial(z1, w2, th)
    sc2, sh2 = _finalize_stats(ps2, pq2, g2, b2, count, eps)
    out = bn_relu(y2, sc2, sh2, pad_output=False)

    out = out[..., :cout]                      # strip channel padding
    return jnp.transpose(out, (0, 3, 1, 2))    # NHWC -> NCHW


# ---------------------------------------------------------------------------
# Pure-JAX reference (correctness checking only).
# ---------------------------------------------------------------------------
def _ref_stage(x_nhwc, w_hwio, gamma, beta, eps=1e-5):
    y = jax.lax.conv_general_dilated(
        x_nhwc, w_hwio, window_strides=(1, 1), padding="SAME",
        dimension_numbers=("NHWC", "HWIO", "NHWC"))
    mean = jnp.mean(y, axis=(0, 1, 2), keepdims=True)
    var = jnp.mean((y - mean) ** 2, axis=(0, 1, 2), keepdims=True)
    yhat = (y - mean) * jax.lax.rsqrt(var + eps)
    return jnp.maximum(yhat * gamma.reshape(1, 1, 1, -1)
                       + beta.reshape(1, 1, 1, -1), 0.0)


def _ref_forward(x_nchw, params):
    x = jnp.transpose(x_nchw, (0, 2, 3, 1))
    x = _ref_stage(x, params["w1"], params["gamma1"], params["beta1"])
    x = _ref_stage(x, params["w2"], params["gamma2"], params["beta2"])
    return jnp.transpose(x, (0, 3, 1, 2))


def init_params(key, in_channels, out_channels):
    """Deterministic synthetic parameters (shapes per encoding_block.__init__)."""
    k1, k2, k3, k4 = jax.random.split(key, 4)
    # Conv weights stored directly in HWIO (= PyTorch OIHW transposed (2,3,1,0)).
    w1 = 0.1 * jax.random.normal(k1, (3, 3, in_channels, out_channels), jnp.float32)
    w2 = 0.1 * jax.random.normal(k2, (3, 3, out_channels, out_channels), jnp.float32)
    gamma1 = 1.0 + 0.1 * jax.random.normal(k3, (out_channels,), jnp.float32)
    gamma2 = 1.0 + 0.1 * jax.random.normal(k4, (out_channels,), jnp.float32)
    beta1 = 0.05 * jnp.arange(out_channels, dtype=jnp.float32)
    beta2 = -0.05 * jnp.arange(out_channels, dtype=jnp.float32)
    return dict(w1=w1, gamma1=gamma1, beta1=beta1,
                w2=w2, gamma2=gamma2, beta2=beta2)


if __name__ == "__main__":
    N, Cin, H, W = 2, 4, 16, 16
    Cout = 8

    key = jax.random.PRNGKey(0)
    kx, kp = jax.random.split(key)
    x = jax.random.normal(kx, (N, Cin, H, W), jnp.float32)  # NCHW input
    params = init_params(kp, Cin, Cout)

    fwd = jax.jit(encoding_block_forward)
    out = jax.block_until_ready(fwd(x, params))

    ref = jax.block_until_ready(_ref_forward(x, params))
    assert out.shape == (N, Cout, H, W), out.shape
    max_err = float(jnp.max(jnp.abs(out - ref)))
    assert jnp.allclose(out, ref, rtol=1e-4, atol=1e-4), max_err

    print("KERNEL_OK")
</pallas_src>

<mosaic_0001>
module attributes {stable_mosaic.version = 11 : i64} {
  func.func @_conv_tap_kernel(%arg0: i32, %arg1: i32, %arg2: memref<1x18x18x128xf32, #tpu.memory_space<vmem>>, %arg3: memref<1152x128xf32, #tpu.memory_space<vmem>>, %arg4: memref<1x8x16x128xf32, #tpu.memory_space<vmem>>, %arg5: memref<1x1x8x128xf32, #tpu.memory_space<vmem>>, %arg6: memref<1x1x8x128xf32, #tpu.memory_space<vmem>>) attributes {dimension_semantics = [#tpu.dimension_semantics<parallel>, #tpu.dimension_semantics<parallel>], iteration_bounds = array<i64: 2, 2>, scalar_prefetch = 0 : i64, scratch_operands = 0 : i64, tpu.core_type = #tpu.core_type<tc>, window_params = [{transform_indices = @transform_0, window_bounds = array<i64: 1, 18, 18, 128>}, {pipeline_mode = #tpu.pipeline_mode<synchronous>, transform_indices = @transform_1, window_bounds = array<i64: 1152, 128>}, {transform_indices = @transform_2, window_bounds = array<i64: 1, 8, 16, 128>}, {transform_indices = @transform_3, window_bounds = array<i64: 1, 1, 8, 128>}, {transform_indices = @transform_4, window_bounds = array<i64: 1, 1, 8, 128>}]} {
    %c8_i32 = arith.constant 8 : i32
    %0 = arith.muli %arg1, %c8_i32 : i32
    %1 = tpu.assume_multiple %0, 8 : i32
    %c0 = arith.constant 0 : index
    %2 = arith.index_cast %1 : i32 to index
    %c0_0 = arith.constant 0 : index
    %c0_1 = arith.constant 0 : index
    %3 = vector.load %arg2[%c0, %2, %c0_0, %c0_1] : memref<1x18x18x128xf32, #tpu.memory_space<vmem>>, vector<1x10x18x128xf32>
    %cst = arith.constant 0.000000e+00 : f32
    %4 = vector.broadcast %cst : f32 to vector<128x128xf32>
    %5 = vector.extract_strided_slice %3 {offsets = [0, 0, 0, 0], sizes = [1, 8, 16, 128], strides = [1, 1, 1, 1]} : vector<1x10x18x128xf32> to vector<1x8x16x128xf32>
    %6 = vector.shape_cast %5 : vector<1x8x16x128xf32> to vector<128x128xf32>
    %c0_2 = arith.constant 0 : index
    %c0_3 = arith.constant 0 : index
    %7 = vector.load %arg3[%c0_2, %c0_3] : memref<1152x128xf32, #tpu.memory_space<vmem>>, vector<128x128xf32>
    %cst_4 = arith.constant dense<0.000000e+00> : vector<128x128xf32>
    %8 = tpu.matmul %6, %7, %cst_4 {dimension_numbers = #tpu.dot_dimension_numbers<[1], [0], [0], [1], [0, 0, 1, 1], [], []>} : vector<128x128xf32>, vector<128x128xf32>, vector<128x128xf32> -> vector<128x128xf32>
    %9 = arith.addf %4, %8 : vector<128x128xf32>
    %10 = vector.extract_strided_slice %3 {offsets = [0, 0, 1, 0], sizes = [1, 8, 16, 128], strides = [1, 1, 1, 1]} : vector<1x10x18x128xf32> to vector<1x8x16x128xf32>
    %11 = vector.shape_cast %10 : vector<1x8x16x128xf32> to vector<128x128xf32>
    %c128 = arith.constant 128 : index
    %c0_5 = arith.constant 0 : index
    %12 = vector.load %arg3[%c128, %c0_5] : memref<1152x128xf32, #tpu.memory_space<vmem>>, vector<128x128xf32>
    %cst_6 = arith.constant dense<0.000000e+00> : vector<128x128xf32>
    %13 = tpu.matmul %11, %12, %cst_6 {dimension_numbers = #tpu.dot_dimension_numbers<[1], [0], [0], [1], [0, 0, 1, 1], [], []>} : vector<128x128xf32>, vector<128x128xf32>, vector<128x128xf32> -> vector<128x128xf32>
    %14 = arith.addf %9, %13 : vector<128x128xf32>
    %15 = vector.extract_strided_slice %3 {offsets = [0, 0, 2, 0], sizes = [1, 8, 16, 128], strides = [1, 1, 1, 1]} : vector<1x10x18x128xf32> to vector<1x8x16x128xf32>
    %16 = vector.shape_cast %15 : vector<1x8x16x128xf32> to vector<128x128xf32>
    %c256 = arith.constant 256 : index
    %c0_7 = arith.constant 0 : index
    %17 = vector.load %arg3[%c256, %c0_7] : memref<1152x128xf32, #tpu.memory_space<vmem>>, vector<128x128xf32>
    %cst_8 = arith.constant dense<0.000000e+00> : vector<128x128xf32>
    %18 = tpu.matmul %16, %17, %cst_8 {dimension_numbers = #tpu.dot_dimension_numbers<[1], [0], [0], [1], [0, 0, 1, 1], [], []>} : vector<128x128xf32>, vector<128x128xf32>, vector<128x128xf32> -> vector<128x128xf32>
    %19 = arith.addf %14, %18 : vector<128x128xf32>
    %20 = vector.extract_strided_slice %3 {offsets = [0, 1, 0, 0], sizes = [1, 8, 16, 128], strides = [1, 1, 1, 1]} : vector<1x10x18x128xf32> to vector<1x8x16x128xf32>
    %21 = vector.shape_cast %20 : vector<1x8x16x128xf32> to vector<128x128xf32>
    %c384 = arith.constant 384 : index
    %c0_9 = arith.constant 0 : index
    %22 = vector.load %arg3[%c384, %c0_9] : memref<1152x128xf32, #tpu.memory_space<vmem>>, vector<128x128xf32>
    %cst_10 = arith.constant dense<0.000000e+00> : vector<128x128xf32>
    %23 = tpu.matmul %21, %22, %cst_10 {dimension_numbers = #tpu.dot_dimension_numbers<[1], [0], [0], [1], [0, 0, 1, 1], [], []>} : vector<128x128xf32>, vector<128x128xf32>, vector<128x128xf32> -> vector<128x128xf32>
    %24 = arith.addf %19, %23 : vector<128x128xf32>
    %25 = vector.extract_strided_slice %3 {offsets = [0, 1, 1, 0], sizes = [1, 8, 16, 128], strides = [1, 1, 1, 1]} : vector<1x10x18x128xf32> to vector<1x8x16x128xf32>
    %26 = vector.shape_cast %25 : vector<1x8x16x128xf32> to vector<128x128xf32>
    %c512 = arith.constant 512 : index
    %c0_11 = arith.constant 0 : index
    %27 = vector.load %arg3[%c512, %c0_11] : memref<1152x128xf32, #tpu.memory_space<vmem>>, vector<128x128xf32>
    %cst_12 = arith.constant dense<0.000000e+00> : vector<128x128xf32>
    %28 = tpu.matmul %26, %27, %cst_12 {dimension_numbers = #tpu.dot_dimension_numbers<[1], [0], [0], [1], [0, 0, 1, 1], [], []>} : vector<128x128xf32>, vector<128x128xf32>, vector<128x128xf32> -> vector<128x128xf32>
    %29 = arith.addf %24, %28 : vector<128x128xf32>
    %30 = vector.extract_strided_slice %3 {offsets = [0, 1, 2, 0], sizes = [1, 8, 16, 128], strides = [1, 1, 1, 1]} : vector<1x10x18x128xf32> to vector<1x8x16x128xf32>
    %31 = vector.shape_cast %30 : vector<1x8x16x128xf32> to vector<128x128xf32>
    %c640 = arith.constant 640 : index
    %c0_13 = arith.constant 0 : index
    %32 = vector.load %arg3[%c640, %c0_13] : memref<1152x128xf32, #tpu.memory_space<vmem>>, vector<128x128xf32>
    %cst_14 = arith.constant dense<0.000000e+00> : vector<128x128xf32>
    %33 = tpu.matmul %31, %32, %cst_14 {dimension_numbers = #tpu.dot_dimension_numbers<[1], [0], [0], [1], [0, 0, 1, 1], [], []>} : vector<128x128xf32>, vector<128x128xf32>, vector<128x128xf32> -> vector<128x128xf32>
    %34 = arith.addf %29, %33 : vector<128x128xf32>
    %35 = vector.extract_strided_slice %3 {offsets = [0, 2, 0, 0], sizes = [1, 8, 16, 128], strides = [1, 1, 1, 1]} : vector<1x10x18x128xf32> to vector<1x8x16x128xf32>
    %36 = vector.shape_cast %35 : vector<1x8x16x128xf32> to vector<128x128xf32>
    %c768 = arith.constant 768 : index
    %c0_15 = arith.constant 0 : index
    %37 = vector.load %arg3[%c768, %c0_15] : memref<1152x128xf32, #tpu.memory_space<vmem>>, vector<128x128xf32>
    %cst_16 = arith.constant dense<0.000000e+00> : vector<128x128xf32>
    %38 = tpu.matmul %36, %37, %cst_16 {dimension_numbers = #tpu.dot_dimension_numbers<[1], [0], [0], [1], [0, 0, 1, 1], [], []>} : vector<128x128xf32>, vector<128x128xf32>, vector<128x128xf32> -> vector<128x128xf32>
    %39 = arith.addf %34, %38 : vector<128x128xf32>
    %40 = vector.extract_strided_slice %3 {offsets = [0, 2, 1, 0], sizes = [1, 8, 16, 128], strides = [1, 1, 1, 1]} : vector<1x10x18x128xf32> to vector<1x8x16x128xf32>
    %41 = vector.shape_cast %40 : vector<1x8x16x128xf32> to vector<128x128xf32>
    %c896 = arith.constant 896 : index
    %c0_17 = arith.constant 0 : index
    %42 = vector.load %arg3[%c896, %c0_17] : memref<1152x128xf32, #tpu.memory_space<vmem>>, vector<128x128xf32>
    %cst_18 = arith.constant dense<0.000000e+00> : vector<128x128xf32>
    %43 = tpu.matmul %41, %42, %cst_18 {dimension_numbers = #tpu.dot_dimension_numbers<[1], [0], [0], [1], [0, 0, 1, 1], [], []>} : vector<128x128xf32>, vector<128x128xf32>, vector<128x128xf32> -> vector<128x128xf32>
    %44 = arith.addf %39, %43 : vector<128x128xf32>
    %45 = vector.extract_strided_slice %3 {offsets = [0, 2, 2, 0], sizes = [1, 8, 16, 128], strides = [1, 1, 1, 1]} : vector<1x10x18x128xf32> to vector<1x8x16x128xf32>
    %46 = vector.shape_cast %45 : vector<1x8x16x128xf32> to vector<128x128xf32>
    %c1024 = arith.constant 1024 : index
    %c0_19 = arith.constant 0 : index
    %47 = vector.load %arg3[%c1024, %c0_19] : memref<1152x128xf32, #tpu.memory_space<vmem>>, vector<128x128xf32>
    %cst_20 = arith.constant dense<0.000000e+00> : vector<128x128xf32>
    %48 = tpu.matmul %46, %47, %cst_20 {dimension_numbers = #tpu.dot_dimension_numbers<[1], [0], [0], [1], [0, 0, 1, 1], [], []>} : vector<128x128xf32>, vector<128x128xf32>, vector<128x128xf32> -> vector<128x128xf32>
    %49 = arith.addf %44, %48 : vector<128x128xf32>
    %50 = vector.shape_cast %49 : vector<128x128xf32> to vector<1x8x16x128xf32>
    %c0_21 = arith.constant 0 : index
    %c0_22 = arith.constant 0 : index
    %c0_23 = arith.constant 0 : index
    %c0_24 = arith.constant 0 : index
    %51 = vector.load %arg4[%c0_21, %c0_22, %c0_23, %c0_24] : memref<1x8x16x128xf32, #tpu.memory_space<vmem>>, vector<1x8x16x128xf32>
    tpu.vector_store %arg4[%c0_21, %c0_22, %c0_23, %c0_24], %50 {strides = array<i32>} : memref<1x8x16x128xf32, #tpu.memory_space<vmem>>, vector<1x8x16x128xf32>,
    %cst_25 = arith.constant dense<0.000000e+00> : vector<128xf32>
    %52 = vector.multi_reduction <add>, %49, %cst_25 [0] : vector<128x128xf32> to vector<128xf32>
    %53 = vector.shape_cast %52 : vector<128xf32> to vector<1x1x1x128xf32>
    %54 = arith.mulf %49, %49 : vector<128x128xf32>
    %cst_26 = arith.constant dense<0.000000e+00> : vector<128xf32>
    %55 = vector.multi_reduction <add>, %54, %cst_26 [0] : vector<128x128xf32> to vector<128xf32>
    %56 = vector.shape_cast %55 : vector<128xf32> to vector<1x1x1x128xf32>
    %57 = vector.shape_cast %53 : vector<1x1x1x128xf32> to vector<1x1x1x128xf32>
    %58 = vector.broadcast %57 : vector<1x1x1x128xf32> to vector<1x1x8x128xf32>
    %c0_27 = arith.constant 0 : index
    %c0_28 = arith.constant 0 : index
    %c0_29 = arith.constant 0 : index
    %c0_30 = arith.constant 0 : index
    %59 = vector.load %arg5[%c0_27, %c0_28, %c0_29, %c0_30] : memref<1x1x8x128xf32, #tpu.memory_space<vmem>>, vector<1x1x8x128xf32>
    tpu.vector_store %arg5[%c0_27, %c0_28, %c0_29, %c0_30], %58 {strides = array<i32>} : memref<1x1x8x128xf32, #tpu.memory_space<vmem>>, vector<1x1x8x128xf32>,
    %60 = vector.shape_cast %56 : vector<1x1x1x128xf32> to vector<1x1x1x128xf32>
    %61 = vector.broadcast %60 : vector<1x1x1x128xf32> to vector<1x1x8x128xf32>
    %c0_31 = arith.constant 0 : index
    %c0_32 = arith.constant 0 : index
    %c0_33 = arith.constant 0 : index
    %c0_34 = arith.constant 0 : index
    %62 = vector.load %arg6[%c0_31, %c0_32, %c0_33, %c0_34] : memref<1x1x8x128xf32, #tpu.memory_space<vmem>>, vector<1x1x8x128xf32>
    tpu.vector_store %arg6[%c0_31, %c0_32, %c0_33, %c0_34], %61 {strides = array<i32>} : memref<1x1x8x128xf32, #tpu.memory_space<vmem>>, vector<1x1x8x128xf32>,
    return
  }
  func.func @transform_0(%arg0: i32, %arg1: i32) -> (i32, i32, i32, i32) {
    %c0_i32 = arith.constant 0 : i32
    %c0_i32_0 = arith.constant 0 : i32
    %c0_i32_1 = arith.constant 0 : i32
    %c0_i32_2 = arith.constant 0 : i32
    return %arg0, %c0_i32, %c0_i32_0, %c0_i32_1 : i32, i32, i32, i32
  }
  func.func @transform_1(%arg0: i32, %arg1: i32) -> (i32, i32) {
    %c0_i32 = arith.constant 0 : i32
    %c0_i32_0 = arith.constant 0 : i32
    %c0_i32_1 = arith.constant 0 : i32
    return %c0_i32, %c0_i32_0 : i32, i32
  }
  func.func @transform_2(%arg0: i32, %arg1: i32) -> (i32, i32, i32, i32) {
    %c0_i32 = arith.constant 0 : i32
    %c0_i32_0 = arith.constant 0 : i32
    %c0_i32_1 = arith.constant 0 : i32
    return %arg0, %arg1, %c0_i32, %c0_i32_0 : i32, i32, i32, i32
  }
  func.func @transform_3(%arg0: i32, %arg1: i32) -> (i32, i32, i32, i32) {
    %c0_i32 = arith.constant 0 : i32
    %c0_i32_0 = arith.constant 0 : i32
    %c0_i32_1 = arith.constant 0 : i32
    return %arg0, %arg1, %c0_i32, %c0_i32_0 : i32, i32, i32, i32
  }
  func.func @transform_4(%arg0: i32, %arg1: i32) -> (i32, i32, i32, i32) {
    %c0_i32 = arith.constant 0 : i32
    %c0_i32_0 = arith.constant 0 : i32
    %c0_i32_1 = arith.constant 0 : i32
    return %arg0, %arg1, %c0_i32, %c0_i32_0 : i32, i32, i32, i32
  }
}

module attributes {stable_mosaic.version = 11 : i64} {
  func.func @_bn_relu_kernel(%arg0: i32, %arg1: memref<1x16x16x128xf32, #tpu.memory_space<vmem>>, %arg2: memref<1x128xf32, #tpu.memory_space<vmem>>, %arg3: memref<1x128xf32, #tpu.memory_space<vmem>>, %arg4: memref<1x16x16x128xf32, #tpu.memory_space<vmem>>) attributes {dimension_semantics = [#tpu.dimension_semantics<parallel>], iteration_bounds = array<i64: 2>, scalar_prefetch = 0 : i64, scratch_operands = 0 : i64, tpu.core_type = #tpu.core_type<tc>, window_params = [{transform_indices = @transform_0, window_bounds = array<i64: 1, 16, 16, 128>}, {pipeline_mode = #tpu.pipeline_mode<synchronous>, transform_indices = @transform_1, window_bounds = array<i64: 1, 128>}, {pipeline_mode = #tpu.pipeline_mode<synchronous>, transform_indices = @transform_2, window_bounds = array<i64: 1, 128>}, {transform_indices = @transform_3, window_bounds = array<i64: 1, 16, 16, 128>}]} {
    %c0 = arith.constant 0 : index
    %c0_0 = arith.constant 0 : index
    %c0_1 = arith.constant 0 : index
    %c0_2 = arith.constant 0 : index
    %0 = vector.load %arg1[%c0, %c0_0, %c0_1, %c0_2] : memref<1x16x16x128xf32, #tpu.memory_space<vmem>>, vector<1x16x16x128xf32>
    %c0_3 = arith.constant 0 : index
    %c0_4 = arith.constant 0 : index
    %1 = vector.load %arg2[%c0_3, %c0_4] : memref<1x128xf32, #tpu.memory_space<vmem>>, vector<1x128xf32>
    %2 = vector.shape_cast %1 : vector<1x128xf32> to vector<1x1x1x128xf32>
    %3 = vector.broadcast %2 : vector<1x1x1x128xf32> to vector<1x16x16x128xf32>
    %4 = arith.mulf %0, %3 : vector<1x16x16x128xf32>
    %c0_5 = arith.constant 0 : index
    %c0_6 = arith.constant 0 : index
    %5 = vector.load %arg3[%c0_5, %c0_6] : memref<1x128xf32, #tpu.memory_space<vmem>>, vector<1x128xf32>
    %6 = vector.shape_cast %5 : vector<1x128xf32> to vector<1x1x1x128xf32>
    %7 = vector.broadcast %6 : vector<1x1x1x128xf32> to vector<1x16x16x128xf32>
    %8 = arith.addf %4, %7 : vector<1x16x16x128xf32>
    %cst = arith.constant 0.000000e+00 : f32
    %9 = vector.broadcast %cst : f32 to vector<1x16x16x128xf32>
    %10 = arith.maximumf %8, %9 : vector<1x16x16x128xf32>
    %c0_7 = arith.constant 0 : index
    %c0_8 = arith.constant 0 : index
    %c0_9 = arith.constant 0 : index
    %c0_10 = arith.constant 0 : index
    %11 = vector.load %arg4[%c0_7, %c0_8, %c0_9, %c0_10] : memref<1x16x16x128xf32, #tpu.memory_space<vmem>>, vector<1x16x16x128xf32>
    tpu.vector_store %arg4[%c0_7, %c0_8, %c0_9, %c0_10], %10 {strides = array<i32>} : memref<1x16x16x128xf32, #tpu.memory_space<vmem>>, vector<1x16x16x128xf32>,
    return
  }
  func.func @transform_0(%arg0: i32) -> (i32, i32, i32, i32) {
    %c0_i32 = arith.constant 0 : i32
    %c0_i32_0 = arith.constant 0 : i32
    %c0_i32_1 = arith.constant 0 : i32
    %c0_i32_2 = arith.constant 0 : i32
    return %arg0, %c0_i32, %c0_i32_0, %c0_i32_1 : i32, i32, i32, i32
  }
  func.func @transform_1(%arg0: i32) -> (i32, i32) {
    %c0_i32 = arith.constant 0 : i32
    %c0_i32_0 = arith.constant 0 : i32
    %c0_i32_1 = arith.constant 0 : i32
    return %c0_i32, %c0_i32_0 : i32, i32
  }
  func.func @transform_2(%arg0: i32) -> (i32, i32) {
    %c0_i32 = arith.constant 0 : i32
    %c0_i32_0 = arith.constant 0 : i32
    %c0_i32_1 = arith.constant 0 : i32
    return %c0_i32, %c0_i32_0 : i32, i32
  }
  func.func @transform_3(%arg0: i32) -> (i32, i32, i32, i32) {
    %c0_i32 = arith.constant 0 : i32
    %c0_i32_0 = arith.constant 0 : i32
    %c0_i32_1 = arith.constant 0 : i32
    %c0_i32_2 = arith.constant 0 : i32
    return %arg0, %c0_i32, %c0_i32_0, %c0_i32_1 : i32, i32, i32, i32
  }
}

module attributes {stable_mosaic.version = 11 : i64} {
  func.func @_bn_relu_kernel(%arg0: i32, %arg1: memref<1x16x16x128xf32, #tpu.memory_space<vmem>>, %arg2: memref<1x128xf32, #tpu.memory_space<vmem>>, %arg3: memref<1x128xf32, #tpu.memory_space<vmem>>, %arg4: memref<1x18x18x128xf32, #tpu.memory_space<vmem>>) attributes {dimension_semantics = [#tpu.dimension_semantics<parallel>], iteration_bounds = array<i64: 2>, scalar_prefetch = 0 : i64, scratch_operands = 0 : i64, tpu.core_type = #tpu.core_type<tc>, window_params = [{transform_indices = @transform_0, window_bounds = array<i64: 1, 16, 16, 128>}, {pipeline_mode = #tpu.pipeline_mode<synchronous>, transform_indices = @transform_1, window_bounds = array<i64: 1, 128>}, {pipeline_mode = #tpu.pipeline_mode<synchronous>, transform_indices = @transform_2, window_bounds = array<i64: 1, 128>}, {transform_indices = @transform_3, window_bounds = array<i64: 1, 18, 18, 128>}]} {
    %c0 = arith.constant 0 : index
    %c0_0 = arith.constant 0 : index
    %c0_1 = arith.constant 0 : index
    %c0_2 = arith.constant 0 : index
    %0 = vector.load %arg1[%c0, %c0_0, %c0_1, %c0_2] : memref<1x16x16x128xf32, #tpu.memory_space<vmem>>, vector<1x16x16x128xf32>
    %c0_3 = arith.constant 0 : index
    %c0_4 = arith.constant 0 : index
    %1 = vector.load %arg2[%c0_3, %c0_4] : memref<1x128xf32, #tpu.memory_space<vmem>>, vector<1x128xf32>
    %2 = vector.shape_cast %1 : vector<1x128xf32> to vector<1x1x1x128xf32>
    %3 = vector.broadcast %2 : vector<1x1x1x128xf32> to vector<1x16x16x128xf32>
    %4 = arith.mulf %0, %3 : vector<1x16x16x128xf32>
    %c0_5 = arith.constant 0 : index
    %c0_6 = arith.constant 0 : index
    %5 = vector.load %arg3[%c0_5, %c0_6] : memref<1x128xf32, #tpu.memory_space<vmem>>, vector<1x128xf32>
    %6 = vector.shape_cast %5 : vector<1x128xf32> to vector<1x1x1x128xf32>
    %7 = vector.broadcast %6 : vector<1x1x1x128xf32> to vector<1x16x16x128xf32>
    %8 = arith.addf %4, %7 : vector<1x16x16x128xf32>
    %cst = arith.constant 0.000000e+00 : f32
    %9 = vector.broadcast %cst : f32 to vector<1x16x16x128xf32>
    %10 = arith.maximumf %8, %9 : vector<1x16x16x128xf32>
    %cst_7 = arith.constant 0.000000e+00 : f32
    %11 = vector.broadcast %cst_7 : f32 to vector<1x18x18x128xf32>
    %c0_8 = arith.constant 0 : index
    %c0_9 = arith.constant 0 : index
    %c0_10 = arith.constant 0 : index
    %c0_11 = arith.constant 0 : index
    %12 = vector.load %arg4[%c0_8, %c0_9, %c0_10, %c0_11] : memref<1x18x18x128xf32, #tpu.memory_space<vmem>>, vector<1x18x18x128xf32>
    tpu.vector_store %arg4[%c0_8, %c0_9, %c0_10, %c0_11], %11 {strides = array<i32>} : memref<1x18x18x128xf32, #tpu.memory_space<vmem>>, vector<1x18x18x128xf32>,
    %c0_12 = arith.constant 0 : index
    %c1 = arith.constant 1 : index
    %c1_13 = arith.constant 1 : index
    %c0_14 = arith.constant 0 : index
    %13 = vector.load %arg4[%c0_12, %c1, %c1_13, %c0_14] : memref<1x18x18x128xf32, #tpu.memory_space<vmem>>, vector<1x16x16x128xf32>
    tpu.vector_store %arg4[%c0_12, %c1, %c1_13, %c0_14], %10 {strides = array<i32>} : memref<1x18x18x128xf32, #tpu.memory_space<vmem>>, vector<1x16x16x128xf32>,
    return
  }
  func.func @transform_0(%arg0: i32) -> (i32, i32, i32, i32) {
    %c0_i32 = arith.constant 0 : i32
    %c0_i32_0 = arith.constant 0 : i32
    %c0_i32_1 = arith.constant 0 : i32
    %c0_i32_2 = arith.constant 0 : i32
    return %arg0, %c0_i32, %c0_i32_0, %c0_i32_1 : i32, i32, i32, i32
  }
  func.func @transform_1(%arg0: i32) -> (i32, i32) {
    %c0_i32 = arith.constant 0 : i32
    %c0_i32_0 = arith.constant 0 : i32
    %c0_i32_1 = arith.constant 0 : i32
    return %c0_i32, %c0_i32_0 : i32, i32
  }
  func.func @transform_2(%arg0: i32) -> (i32, i32) {
    %c0_i32 = arith.constant 0 : i32
    %c0_i32_0 = arith.constant 0 : i32
    %c0_i32_1 = arith.constant 0 : i32
    return %c0_i32, %c0_i32_0 : i32, i32
  }
  func.func @transform_3(%arg0: i32) -> (i32, i32, i32, i32) {
    %c0_i32 = arith.constant 0 : i32
    %c0_i32_0 = arith.constant 0 : i32
    %c0_i32_1 = arith.constant 0 : i32
    %c0_i32_2 = arith.constant 0 : i32
    return %arg0, %c0_i32, %c0_i32_0, %c0_i32_1 : i32, i32, i32, i32
  }
}

</mosaic_0001>

<llo_original>
// kernel: encoding_block_forward.7
$region0: #{encoding_block_forward.7}
  #allocation0 [shape = 'u32[]', space=smem, size = 0x4, offset = 0x4, fixed_abs, tag = 'smem constant byte address 0x4 - core index']
  #allocation1 [shape = 'u32[72,128]{1,0:T(1,128)}', space=vmem, size = 0x9000, scoped, tag = 'internal scratch']
  %s0 = inlined_call_operand.vmem [shape: f32[2,16,16,128], index: 0, kind: input, shape index: {}]
  %s1 = inlined_call_operand.vmem [shape: f32[1,128], index: 1, kind: input, shape index: {}]
  %s2 = inlined_call_operand.vmem [shape: f32[1,128], index: 2, kind: input, shape index: {}]
  %s3 = inlined_call_operand.vmem [shape: f32[2,16,16,128], index: 3, kind: output, shape index: {}]
  %s4 = sld [smem:[#allocation0]]
  $region45: #{encoding_block_forward.7} parent=0
    _
  %s6 = ssub.s32 1, %s4
  %s7 = scalar_select 0, %s6, %s4
  loop: start=0, step=1, limit=4
  $region2: #{encoding_block_forward.7} parent=0 // loop_pre_header
    _
  $region3: #{encoding_block_forward.7} parent=0 // loop_header
    %s9 = sphi 0, %s13
    %p10 = scmp.ge.s32.totalorder %s9, 4
    %s19 = sphi 0, %s21
    %s22 = sphi 0, %s19
    %s23 = sphi 0, %s22
    %s39 = sphi 0, %s23
    %s43 = sphi 0, %s43
    %s45 = sphi 0, %s43
    %s46 = sphi 0, %s45
    %s60 = sphi 0, %s46
    %s64 = sphi 0, %s64
    %s66 = sphi 0, %s64
    %s67 = sphi 0, %s66
    %s81 = sphi 0, %s67
    %s87 = sphi 0, %s89
    %s90 = sphi 0, %s87
    %s91 = sphi 0, %s90
    %s107 = sphi 0, %s91
  $region4: #{encoding_block_forward.7} parent=0 // loop_header_branch
    %12 = sbr.rel (%p10) target = $region8
  $region5: #{encoding_block_forward.7} parent=0 // loop_body
    %s14 = ssub.s32 %s9, 1
    %s15 = ssub.s32 %s9, 2
    %s16 = sadd.s32 %s9, 1
    %s17 = ssub.s32 %s9, %s16
    %p18 = scmp.eq.s32.totalorder %s17, 0
    %s20 = sadd.s32 %s19, 1
    %s21 = scalar_select %p18, %s19, %s20
    %p24 = pneg %p18
    %p25 = scmp.eq.s32.totalorder %s9, 1
    %p26 = por %p24, %p25
    %p27 = scmp.ne.s32.totalorder %s19, %s22
    %p28 = scmp.eq.s32.totalorder %s9, 0
    %p29 = por %p27, %p28
    %p30 = scmp.ne.s32.totalorder %s19, %s22
    %p31 = scmp.eq.s32.totalorder %s14, 1
    %p32 = por %p30, %p31
    %p33 = scmp.ne.s32.totalorder %s22, %s23
    %p34 = scmp.eq.s32.totalorder %s14, 0
    %p35 = por %p33, %p34
    %p36 = scmp.ne.s32.totalorder %s22, %s23
    %p37 = scmp.eq.s32.totalorder %s15, 1
    %p38 = por %p36, %p37
    %p40 = scmp.ne.s32.totalorder %s23, %s39
    %p41 = scmp.eq.s32.totalorder %s15, 0
    %p42 = por %p40, %p41
    %s44 = sadd.s32 %s43, 1
    %p47 = scmp.eq.s32.totalorder %s9, 1
    %p48 = scmp.ne.s32.totalorder %s43, %s45
    %p49 = scmp.eq.s32.totalorder %s9, 0
    %p50 = por %p48, %p49
    %p51 = scmp.ne.s32.totalorder %s43, %s45
    %p52 = scmp.eq.s32.totalorder %s14, 1
    %p53 = por %p51, %p52
    %p54 = scmp.ne.s32.totalorder %s45, %s46
    %p55 = scmp.eq.s32.totalorder %s14, 0
    %p56 = por %p54, %p55
    %p57 = scmp.ne.s32.totalorder %s45, %s46
    %p58 = scmp.eq.s32.totalorder %s15, 1
    %p59 = por %p57, %p58
    %p61 = scmp.ne.s32.totalorder %s46, %s60
    %p62 = scmp.eq.s32.totalorder %s15, 0
    %p63 = por %p61, %p62
    %s65 = sadd.s32 %s64, 1
    %p68 = scmp.eq.s32.totalorder %s9, 1
    %p69 = scmp.ne.s32.totalorder %s64, %s66
    %p70 = scmp.eq.s32.totalorder %s9, 0
    %p71 = por %p69, %p70
    %p72 = scmp.ne.s32.totalorder %s64, %s66
    %p73 = scmp.eq.s32.totalorder %s14, 1
    %p74 = por %p72, %p73
    %p75 = scmp.ne.s32.totalorder %s66, %s67
    %p76 = scmp.eq.s32.totalorder %s14, 0
    %p77 = por %p75, %p76
    %p78 = scmp.ne.s32.totalorder %s66, %s67
    %p79 = scmp.eq.s32.totalorder %s15, 1
    %p80 = por %p78, %p79
    %p82 = scmp.ne.s32.totalorder %s67, %s81
    %p83 = scmp.eq.s32.totalorder %s15, 0
    %p84 = por %p82, %p83
    %s85 = ssub.s32 %s9, %s16
    %p86 = scmp.eq.s32.totalorder %s85, 0
    %s88 = sadd.s32 %s87, 1
    %s89 = scalar_select %p86, %s87, %s88
    %p92 = pneg %p86
    %p93 = scmp.eq.s32.totalorder %s9, 1
    %p94 = por %p92, %p93
    %p95 = scmp.ne.s32.totalorder %s87, %s90
    %p96 = scmp.eq.s32.totalorder %s9, 0
    %p97 = por %p95, %p96
    %p98 = scmp.ne.s32.totalorder %s87, %s90
    %p99 = scmp.eq.s32.totalorder %s14, 1
    %p100 = por %p98, %p99
    %p101 = scmp.ne.s32.totalorder %s90, %s91
    %p102 = scmp.eq.s32.totalorder %s14, 0
    %p103 = por %p101, %p102
    %p104 = scmp.ne.s32.totalorder %s90, %s91
    %p105 = scmp.eq.s32.totalorder %s15, 1
    %p106 = por %p104, %p105
    %p108 = scmp.ne.s32.totalorder %s91, %s107
    %p109 = scmp.eq.s32.totalorder %s15, 0
    %p110 = por %p108, %p109
    %p111 = scmp.le.s32.totalorder 1, %s9
    %p112 = scmp.lt.s32.totalorder %s9, 3
    %p113 = pnand %p111, %p112
    %p114 = pneg %p113
    // Predicated region
    $region9: #{encoding_block_forward.7} parent=5 // pred_check
      _
    $region10: #{encoding_block_forward.7} parent=5 // pred_check_branch
      %116 = sbr.rel (%p113) target = $region12
    $region11: #{encoding_block_forward.7} parent=5 // pred_region
      %s117 = ssub.s32 %s9, 1
      // Predicated region
      $region13: #{encoding_block_forward.7} parent=11 // pred_check
        %p118 = pneg %p56
      $region14: #{encoding_block_forward.7} parent=11 // pred_check_branch
        %120 = sbr.rel (%p118) target = $region16
      $region15: #{encoding_block_forward.7} parent=11 // pred_region
        _
      $region16: #{encoding_block_forward.7} parent=11 // pred_fallthru
        _
      // Predicated region
      $region17: #{encoding_block_forward.7} parent=11 // pred_check
        %p121 = pneg %p77
      $region18: #{encoding_block_forward.7} parent=11 // pred_check_branch
        %123 = sbr.rel (%p121) target = $region20
      $region19: #{encoding_block_forward.7} parent=11 // pred_region
        _
      $region20: #{encoding_block_forward.7} parent=11 // pred_fallthru
        _
    $region12: #{encoding_block_forward.7} parent=5 // pred_fallthru
      _
    %p124 = scmp.lt.s32.totalorder %s9, 2
    // Predicated region
    $region21: #{encoding_block_forward.7} parent=5 // pred_check
      %p125 = pneg %p124
    $region22: #{encoding_block_forward.7} parent=5 // pred_check_branch
      %127 = sbr.rel (%p125) target = $region24
    $region23: #{encoding_block_forward.7} parent=5 // pred_region
      // Predicated region
      $region25: #{encoding_block_forward.7} parent=23 // pred_check
        %p128 = pneg %p29
      $region26: #{encoding_block_forward.7} parent=23 // pred_check_branch
        %130 = sbr.rel (%p128) target = $region28
      $region27: #{encoding_block_forward.7} parent=23 // pred_region
        %p131 = scmp.lt.s32.totalorder %s9, 1
        %s132 = scalar_select %p131, %s9, 1
        %s133 = smul.addr %s132, 32
        %s134 = smul.addr %s133, 8
        %s135 = scalar_lea.vmem %s0, %s134
      $region28: #{encoding_block_forward.7} parent=23 // pred_fallthru
        _
    $region24: #{encoding_block_forward.7} parent=5 // pred_fallthru
      _
    %p136 = scmp.le.s32.totalorder 1, %s9
    %p137 = scmp.lt.s32.totalorder %s9, 3
    %p138 = pnand %p136, %p137
    %p139 = pneg %p138
    // Predicated region
    $region29: #{encoding_block_forward.7} parent=5 // pred_check
      _
    $region30: #{encoding_block_forward.7} parent=5 // pred_check_branch
      %141 = sbr.rel (%p138) target = $region32
    $region31: #{encoding_block_forward.7} parent=5 // pred_region
      %s142 = ssub.s32 %s9, 1
      %p143 = scmp.lt.s32.totalorder %s14, 1
      %s144 = scalar_select %p143, %s14, 1
      %s145 = smul.addr %s144, 32
      %s146 = smul.addr %s145, 8
      %s147 = scalar_lea.vmem %s0, %s146
      %p148 = pneg %p35
      %p149 = pneg %p32
      %p150 = pneg %p56
      %p151 = pneg %p53
      %p152 = pneg %p77
      %p153 = pneg %p74
      %p154 = pneg %p103
      %p155 = pneg %p100
      %p156 = scmp.lt.s32.totalorder %s14, 1
      %s157 = scalar_select %p156, %s14, 1
      %s158 = smul.addr %s157, 32
      %s159 = smul.addr %s158, 8
      %s160 = scalar_lea.vmem %s3, %s159
      %p161 = scmp.lt.s32.totalorder %s14, 1
      %s162 = scalar_select %p161, %s14, 1
      %s163 = smul.addr %s162, 32
      %s164 = smul.addr %s163, 8
      %s165 = scalar_lea.vmem %s0, %s164
      %p166 = scmp.lt.s32.totalorder %s14, 1
      %s167 = scalar_select %p166, %s14, 1
      %s168 = smul.addr %s167, 32
      %s169 = smul.addr %s168, 8
      %s170 = scalar_lea.vmem %s3, %s169
      %v171 = vld [vmem:[%s165] sm:$0xff]
      %v172 = vld [vmem:[%s165 + $0x8] sm:$0xff]
      %v173 = vld [vmem:[%s165 + $0x10] sm:$0xff]
      %v174 = vld [vmem:[%s165 + $0x18] sm:$0xff]
      %v175 = vld [vmem:[%s165 + $0x20] sm:$0xff]
      %v176 = vld [vmem:[%s165 + $0x28] sm:$0xff]
      %v177 = vld [vmem:[%s165 + $0x30] sm:$0xff]
      %v178 = vld [vmem:[%s165 + $0x38] sm:$0xff]
      %v179 = vld [vmem:[%s165 + $0x40] sm:$0xff]
      %v180 = vld [vmem:[%s165 + $0x48] sm:$0xff]
      %v181 = vld [vmem:[%s165 + $0x50] sm:$0xff]
      %v182 = vld [vmem:[%s165 + $0x58] sm:$0xff]
      %v183 = vld [vmem:[%s165 + $0x60] sm:$0xff]
      %v184 = vld [vmem:[%s165 + $0x68] sm:$0xff]
      %v185 = vld [vmem:[%s165 + $0x70] sm:$0xff]
      %v186 = vld [vmem:[%s165 + $0x78] sm:$0xff]
      %v187 = vld [vmem:[%s165 + $0x80] sm:$0xff]
      %v188 = vld [vmem:[%s165 + $0x88] sm:$0xff]
      %v189 = vld [vmem:[%s165 + $0x90] sm:$0xff]
      %v190 = vld [vmem:[%s165 + $0x98] sm:$0xff]
      %v191 = vld [vmem:[%s165 + $0xa0] sm:$0xff]
      %v192 = vld [vmem:[%s165 + $0xa8] sm:$0xff]
      %v193 = vld [vmem:[%s165 + $0xb0] sm:$0xff]
      %v194 = vld [vmem:[%s165 + $0xb8] sm:$0xff]
      %v195 = vld [vmem:[%s165 + $0xc0] sm:$0xff]
      %v196 = vld [vmem:[%s165 + $0xc8] sm:$0xff]
      %v197 = vld [vmem:[%s165 + $0xd0] sm:$0xff]
      %v198 = vld [vmem:[%s165 + $0xd8] sm:$0xff]
      %v199 = vld [vmem:[%s165 + $0xe0] sm:$0xff]
      %v200 = vld [vmem:[%s165 + $0xe8] sm:$0xff]
      %v201 = vld [vmem:[%s165 + $0xf0] sm:$0xff]
      %v202 = vld [vmem:[%s165 + $0xf8] sm:$0xff]
      %v203 = vld [vmem:[%s1] sm:$0x1]
      %v205 = vperm.slane %v203, 0
      %v207 = vmul.f32 %v171, %v205
      %v208 = vmul.f32 %v172, %v205
      %v209 = vmul.f32 %v173, %v205
      %v210 = vmul.f32 %v174, %v205
      %v211 = vmul.f32 %v175, %v205
      %v212 = vmul.f32 %v176, %v205
      %v213 = vmul.f32 %v177, %v205
      %v214 = vmul.f32 %v178, %v205
      %v215 = vmul.f32 %v179, %v205
      %v216 = vmul.f32 %v180, %v205
      %v217 = vmul.f32 %v181, %v205
      %v218 = vmul.f32 %v182, %v205
      %v219 = vmul.f32 %v183, %v205
      %v220 = vmul.f32 %v184, %v205
      %v221 = vmul.f32 %v185, %v205
      %v222 = vmul.f32 %v186, %v205
      %v223 = vmul.f32 %v187, %v205
      %v224 = vmul.f32 %v188, %v205
      %v225 = vmul.f32 %v189, %v205
      %v226 = vmul.f32 %v190, %v205
      %v227 = vmul.f32 %v191, %v205
      %v228 = vmul.f32 %v192, %v205
      %v229 = vmul.f32 %v193, %v205
      %v230 = vmul.f32 %v194, %v205
      %v231 = vmul.f32 %v195, %v205
      %v232 = vmul.f32 %v196, %v205
      %v233 = vmul.f32 %v197, %v205
      %v234 = vmul.f32 %v198, %v205
      %v235 = vmul.f32 %v199, %v205
      %v236 = vmul.f32 %v200, %v205
      %v237 = vmul.f32 %v201, %v205
      %v238 = vmul.f32 %v202, %v205
      %v239 = vld [vmem:[%s2] sm:$0x1]
      %v241 = vperm.slane %v239, 0
      %v243 = vadd.f32 %v207, %v241
      %v244 = vadd.f32 %v208, %v241
      %v245 = vadd.f32 %v209, %v241
      %v246 = vadd.f32 %v210, %v241
      %v247 = vadd.f32 %v211, %v241
      %v248 = vadd.f32 %v212, %v241
      %v249 = vadd.f32 %v213, %v241
      %v250 = vadd.f32 %v214, %v241
      %v251 = vadd.f32 %v215, %v241
      %v252 = vadd.f32 %v216, %v241
      %v253 = vadd.f32 %v217, %v241
      %v254 = vadd.f32 %v218, %v241
      %v255 = vadd.f32 %v219, %v241
      %v256 = vadd.f32 %v220, %v241
      %v257 = vadd.f32 %v221, %v241
      %v258 = vadd.f32 %v222, %v241
      %v259 = vadd.f32 %v223, %v241
      %v260 = vadd.f32 %v224, %v241
      %v261 = vadd.f32 %v225, %v241
      %v262 = vadd.f32 %v226, %v241
      %v263 = vadd.f32 %v227, %v241
      %v264 = vadd.f32 %v228, %v241
      %v265 = vadd.f32 %v229, %v241
      %v266 = vadd.f32 %v230, %v241
      %v267 = vadd.f32 %v231, %v241
      %v268 = vadd.f32 %v232, %v241
      %v269 = vadd.f32 %v233, %v241
      %v270 = vadd.f32 %v234, %v241
      %v271 = vadd.f32 %v235, %v241
      %v272 = vadd.f32 %v236, %v241
      %v273 = vadd.f32 %v237, %v241
      %v274 = vadd.f32 %v238, %v241
      %v275 = vmax.f32 %v243, 0.0
      %v276 = vmax.f32 %v244, 0.0
      %v277 = vmax.f32 %v245, 0.0
      %v278 = vmax.f32 %v246, 0.0
      %v279 = vmax.f32 %v247, 0.0
      %v280 = vmax.f32 %v248, 0.0
      %v281 = vmax.f32 %v249, 0.0
      %v282 = vmax.f32 %v250, 0.0
      %v283 = vmax.f32 %v251, 0.0
      %v284 = vmax.f32 %v252, 0.0
      %v285 = vmax.f32 %v253, 0.0
      %v286 = vmax.f32 %v254, 0.0
      %v287 = vmax.f32 %v255, 0.0
      %v288 = vmax.f32 %v256, 0.0
      %v289 = vmax.f32 %v257, 0.0
      %v290 = vmax.f32 %v258, 0.0
      %v291 = vmax.f32 %v259, 0.0
      %v292 = vmax.f32 %v260, 0.0
      %v293 = vmax.f32 %v261, 0.0
      %v294 = vmax.f32 %v262, 0.0
      %v295 = vmax.f32 %v263, 0.0
      %v296 = vmax.f32 %v264, 0.0
      %v297 = vmax.f32 %v265, 0.0
      %v298 = vmax.f32 %v266, 0.0
      %v299 = vmax.f32 %v267, 0.0
      %v300 = vmax.f32 %v268, 0.0
      %v301 = vmax.f32 %v269, 0.0
      %v302 = vmax.f32 %v270, 0.0
      %v303 = vmax.f32 %v271, 0.0
      %v304 = vmax.f32 %v272, 0.0
      %v305 = vmax.f32 %v273, 0.0
      %v306 = vmax.f32 %v274, 0.0
      %307 = vst [vmem:[%s170] sm:$0xff] %v275
      %308 = vst [vmem:[%s170 + $0x8] sm:$0xff] %v276
      %309 = vst [vmem:[%s170 + $0x10] sm:$0xff] %v277
      %310 = vst [vmem:[%s170 + $0x18] sm:$0xff] %v278
      %311 = vst [vmem:[%s170 + $0x20] sm:$0xff] %v279
      %312 = vst [vmem:[%s170 + $0x28] sm:$0xff] %v280
      %313 = vst [vmem:[%s170 + $0x30] sm:$0xff] %v281
      %314 = vst [vmem:[%s170 + $0x38] sm:$0xff] %v282
      %315 = vst [vmem:[%s170 + $0x40] sm:$0xff] %v283
      %316 = vst [vmem:[%s170 + $0x48] sm:$0xff] %v284
      %317 = vst [vmem:[%s170 + $0x50] sm:$0xff] %v285
      %318 = vst [vmem:[%s170 + $0x58] sm:$0xff] %v286
      %319 = vst [vmem:[%s170 + $0x60] sm:$0xff] %v287
      %320 = vst [vmem:[%s170 + $0x68] sm:$0xff] %v288
      %321 = vst [vmem:[%s170 + $0x70] sm:$0xff] %v289
      %322 = vst [vmem:[%s170 + $0x78] sm:$0xff] %v290
      %323 = vst [vmem:[%s170 + $0x80] sm:$0xff] %v291
      %324 = vst [vmem:[%s170 + $0x88] sm:$0xff] %v292
      %325 = vst [vmem:[%s170 + $0x90] sm:$0xff] %v293
      %326 = vst [vmem:[%s170 + $0x98] sm:$0xff] %v294
      %327 = vst [vmem:[%s170 + $0xa0] sm:$0xff] %v295
      %328 = vst [vmem:[%s170 + $0xa8] sm:$0xff] %v296
      %329 = vst [vmem:[%s170 + $0xb0] sm:$0xff] %v297
      %330 = vst [vmem:[%s170 + $0xb8] sm:$0xff] %v298
      %331 = vst [vmem:[%s170 + $0xc0] sm:$0xff] %v299
      %332 = vst [vmem:[%s170 + $0xc8] sm:$0xff] %v300
      %333 = vst [vmem:[%s170 + $0xd0] sm:$0xff] %v301
      %334 = vst [vmem:[%s170 + $0xd8] sm:$0xff] %v302
      %335 = vst [vmem:[%s170 + $0xe0] sm:$0xff] %v303
      %336 = vst [vmem:[%s170 + $0xe8] sm:$0xff] %v304
      %337 = vst [vmem:[%s170 + $0xf0] sm:$0xff] %v305
      %338 = vst [vmem:[%s170 + $0xf8] sm:$0xff] %v306
      %p339 = scmp.lt.s32.totalorder %s14, 1
      %s340 = scalar_select %p339, %s14, 1
      %s341 = smul.addr %s340, 32
      %s342 = smul.addr %s341, 8
      %s343 = scalar_lea.vmem %s3, %s342
      // Predicated region
      $region33: #{encoding_block_forward.7} parent=31 // pred_check
        %p344 = pneg %p100
      $region34: #{encoding_block_forward.7} parent=31 // pred_check_branch
        %346 = sbr.rel (%p344) target = $region36
      $region35: #{encoding_block_forward.7} parent=31 // pred_region
        _
      $region36: #{encoding_block_forward.7} parent=31 // pred_fallthru
        _
    $region32: #{encoding_block_forward.7} parent=5 // pred_fallthru
      _
    %p347 = scmp.le.s32.totalorder 2, %s9
    // Predicated region
    $region37: #{encoding_block_forward.7} parent=5 // pred_check
      %p348 = pneg %p347
    $region38: #{encoding_block_forward.7} parent=5 // pred_check_branch
      %350 = sbr.rel (%p348) target = $region40
    $region39: #{encoding_block_forward.7} parent=5 // pred_region
      %s351 = ssub.s32 %s9, 2
      // Predicated region
      $region41: #{encoding_block_forward.7} parent=39 // pred_check
        %p352 = pneg %p106
      $region42: #{encoding_block_forward.7} parent=39 // pred_check_branch
        %354 = sbr.rel (%p352) target = $region44
      $region43: #{encoding_block_forward.7} parent=39 // pred_region
        %p355 = scmp.lt.s32.totalorder %s15, 1
        %s356 = scalar_select %p355, %s15, 1
        %s357 = smul.addr %s356, 32
        %s358 = smul.addr %s357, 8
        %s359 = scalar_lea.vmem %s3, %s358
      $region44: #{encoding_block_forward.7} parent=39 // pred_fallthru
        _
    $region40: #{encoding_block_forward.7} parent=5 // pred_fallthru
      _
  $region6: #{encoding_block_forward.7} parent=0 // loop_footer
    %s13 = sadd.s32 1, %s9
  $region7: #{encoding_block_forward.7} parent=0 // loop_footer_branch
    %8 = sbr.rel target = $region3
  $region8: #{encoding_block_forward.7} parent=0 // loop_exit
    _

// kernel: encoding_block_forward.5
$region0: #{encoding_block_forward.5}
  #allocation0 [shape = 'u32[]', space=smem, size = 0x4, offset = 0x4, fixed_abs, tag = 'smem constant byte address 0x4 - core index']
  #allocation1 [shape = 'u32[72,128]{1,0:T(1,128)}', space=vmem, size = 0x9000, scoped, tag = 'internal scratch']
  %s0 = inlined_call_operand.vmem [shape: f32[2,16,16,128], index: 0, kind: input, shape index: {}]
  %s1 = inlined_call_operand.vmem [shape: f32[1,128], index: 1, kind: input, shape index: {}]
  %s2 = inlined_call_operand.vmem [shape: f32[1,128], index: 2, kind: input, shape index: {}]
  %s3 = inlined_call_operand.vmem [shape: f32[2,18,18,128], index: 3, kind: output, shape index: {}]
  %s4 = sld [smem:[#allocation0]]
  $region45: #{encoding_block_forward.5} parent=0
    _
  %s6 = ssub.s32 1, %s4
  %s7 = scalar_select 0, %s6, %s4
  loop: start=0, step=1, limit=4
  $region2: #{encoding_block_forward.5} parent=0 // loop_pre_header
    _
  $region3: #{encoding_block_forward.5} parent=0 // loop_header
    %s9 = sphi 0, %s13
    %p10 = scmp.ge.s32.totalorder %s9, 4
    %s19 = sphi 0, %s21
    %s22 = sphi 0, %s19
    %s23 = sphi 0, %s22
    %s39 = sphi 0, %s23
    %s43 = sphi 0, %s43
    %s45 = sphi 0, %s43
    %s46 = sphi 0, %s45
    %s60 = sphi 0, %s46
    %s64 = sphi 0, %s64
    %s66 = sphi 0, %s64
    %s67 = sphi 0, %s66
    %s81 = sphi 0, %s67
    %s87 = sphi 0, %s89
    %s90 = sphi 0, %s87
    %s91 = sphi 0, %s90
    %s107 = sphi 0, %s91
  $region4: #{encoding_block_forward.5} parent=0 // loop_header_branch
    %12 = sbr.rel (%p10) target = $region8
  $region5: #{encoding_block_forward.5} parent=0 // loop_body
    %s14 = ssub.s32 %s9, 1
    %s15 = ssub.s32 %s9, 2
    %s16 = sadd.s32 %s9, 1
    %s17 = ssub.s32 %s9, %s16
    %p18 = scmp.eq.s32.totalorder %s17, 0
    %s20 = sadd.s32 %s19, 1
    %s21 = scalar_select %p18, %s19, %s20
    %p24 = pneg %p18
    %p25 = scmp.eq.s32.totalorder %s9, 1
    %p26 = por %p24, %p25
    %p27 = scmp.ne.s32.totalorder %s19, %s22
    %p28 = scmp.eq.s32.totalorder %s9, 0
    %p29 = por %p27, %p28
    %p30 = scmp.ne.s32.totalorder %s19, %s22
    %p31 = scmp.eq.s32.totalorder %s14, 1
    %p32 = por %p30, %p31
    %p33 = scmp.ne.s32.totalorder %s22, %s23
    %p34 = scmp.eq.s32.totalorder %s14, 0
    %p35 = por %p33, %p34
    %p36 = scmp.ne.s32.totalorder %s22, %s23
    %p37 = scmp.eq.s32.totalorder %s15, 1
    %p38 = por %p36, %p37
    %p40 = scmp.ne.s32.totalorder %s23, %s39
    %p41 = scmp.eq.s32.totalorder %s15, 0
    %p42 = por %p40, %p41
    %s44 = sadd.s32 %s43, 1
    %p47 = scmp.eq.s32.totalorder %s9, 1
    %p48 = scmp.ne.s32.totalorder %s43, %s45
    %p49 = scmp.eq.s32.totalorder %s9, 0
    %p50 = por %p48, %p49
    %p51 = scmp.ne.s32.totalorder %s43, %s45
    %p52 = scmp.eq.s32.totalorder %s14, 1
    %p53 = por %p51, %p52
    %p54 = scmp.ne.s32.totalorder %s45, %s46
    %p55 = scmp.eq.s32.totalorder %s14, 0
    %p56 = por %p54, %p55
    %p57 = scmp.ne.s32.totalorder %s45, %s46
    %p58 = scmp.eq.s32.totalorder %s15, 1
    %p59 = por %p57, %p58
    %p61 = scmp.ne.s32.totalorder %s46, %s60
    %p62 = scmp.eq.s32.totalorder %s15, 0
    %p63 = por %p61, %p62
    %s65 = sadd.s32 %s64, 1
    %p68 = scmp.eq.s32.totalorder %s9, 1
    %p69 = scmp.ne.s32.totalorder %s64, %s66
    %p70 = scmp.eq.s32.totalorder %s9, 0
    %p71 = por %p69, %p70
    %p72 = scmp.ne.s32.totalorder %s64, %s66
    %p73 = scmp.eq.s32.totalorder %s14, 1
    %p74 = por %p72, %p73
    %p75 = scmp.ne.s32.totalorder %s66, %s67
    %p76 = scmp.eq.s32.totalorder %s14, 0
    %p77 = por %p75, %p76
    %p78 = scmp.ne.s32.totalorder %s66, %s67
    %p79 = scmp.eq.s32.totalorder %s15, 1
    %p80 = por %p78, %p79
    %p82 = scmp.ne.s32.totalorder %s67, %s81
    %p83 = scmp.eq.s32.totalorder %s15, 0
    %p84 = por %p82, %p83
    %s85 = ssub.s32 %s9, %s16
    %p86 = scmp.eq.s32.totalorder %s85, 0
    %s88 = sadd.s32 %s87, 1
    %s89 = scalar_select %p86, %s87, %s88
    %p92 = pneg %p86
    %p93 = scmp.eq.s32.totalorder %s9, 1
    %p94 = por %p92, %p93
    %p95 = scmp.ne.s32.totalorder %s87, %s90
    %p96 = scmp.eq.s32.totalorder %s9, 0
    %p97 = por %p95, %p96
    %p98 = scmp.ne.s32.totalorder %s87, %s90
    %p99 = scmp.eq.s32.totalorder %s14, 1
    %p100 = por %p98, %p99
    %p101 = scmp.ne.s32.totalorder %s90, %s91
    %p102 = scmp.eq.s32.totalorder %s14, 0
    %p103 = por %p101, %p102
    %p104 = scmp.ne.s32.totalorder %s90, %s91
    %p105 = scmp.eq.s32.totalorder %s15, 1
    %p106 = por %p104, %p105
    %p108 = scmp.ne.s32.totalorder %s91, %s107
    %p109 = scmp.eq.s32.totalorder %s15, 0
    %p110 = por %p108, %p109
    %p111 = scmp.le.s32.totalorder 1, %s9
    %p112 = scmp.lt.s32.totalorder %s9, 3
    %p113 = pnand %p111, %p112
    %p114 = pneg %p113
    // Predicated region
    $region9: #{encoding_block_forward.5} parent=5 // pred_check
      _
    $region10: #{encoding_block_forward.5} parent=5 // pred_check_branch
      %116 = sbr.rel (%p113) target = $region12
    $region11: #{encoding_block_forward.5} parent=5 // pred_region
      %s117 = ssub.s32 %s9, 1
      // Predicated region
      $region13: #{encoding_block_forward.5} parent=11 // pred_check
        %p118 = pneg %p56
      $region14: #{encoding_block_forward.5} parent=11 // pred_check_branch
        %120 = sbr.rel (%p118) target = $region16
      $region15: #{encoding_block_forward.5} parent=11 // pred_region
        _
      $region16: #{encoding_block_forward.5} parent=11 // pred_fallthru
        _
      // Predicated region
      $region17: #{encoding_block_forward.5} parent=11 // pred_check
        %p121 = pneg %p77
      $region18: #{encoding_block_forward.5} parent=11 // pred_check_branch
        %123 = sbr.rel (%p121) target = $region20
      $region19: #{encoding_block_forward.5} parent=11 // pred_region
        _
      $region20: #{encoding_block_forward.5} parent=11 // pred_fallthru
        _
    $region12: #{encoding_block_forward.5} parent=5 // pred_fallthru
      _
    %p124 = scmp.lt.s32.totalorder %s9, 2
    // Predicated region
    $region21: #{encoding_block_forward.5} parent=5 // pred_check
      %p125 = pneg %p124
    $region22: #{encoding_block_forward.5} parent=5 // pred_check_branch
      %127 = sbr.rel (%p125) target = $region24
    $region23: #{encoding_block_forward.5} parent=5 // pred_region
      // Predicated region
      $region25: #{encoding_block_forward.5} parent=23 // pred_check
        %p128 = pneg %p29
      $region26: #{encoding_block_forward.5} parent=23 // pred_check_branch
        %130 = sbr.rel (%p128) target = $region28
      $region27: #{encoding_block_forward.5} parent=23 // pred_region
        %p131 = scmp.lt.s32.totalorder %s9, 1
        %s132 = scalar_select %p131, %s9, 1
        %s133 = smul.addr %s132, 32
        %s134 = smul.addr %s133, 8
        %s135 = scalar_lea.vmem %s0, %s134
      $region28: #{encoding_block_forward.5} parent=23 // pred_fallthru
        _
    $region24: #{encoding_block_forward.5} parent=5 // pred_fallthru
      _
    %p136 = scmp.le.s32.totalorder 1, %s9
    %p137 = scmp.lt.s32.totalorder %s9, 3
    %p138 = pnand %p136, %p137
    %p139 = pneg %p138
    // Predicated region
    $region29: #{encoding_block_forward.5} parent=5 // pred_check
      _
    $region30: #{encoding_block_forward.5} parent=5 // pred_check_branch
      %141 = sbr.rel (%p138) target = $region32
    $region31: #{encoding_block_forward.5} parent=5 // pred_region
      %s142 = ssub.s32 %s9, 1
      %p143 = scmp.lt.s32.totalorder %s14, 1
      %s144 = scalar_select %p143, %s14, 1
      %s145 = smul.addr %s144, 32
      %s146 = smul.addr %s145, 8
      %s147 = scalar_lea.vmem %s0, %s146
      %p148 = pneg %p35
      %p149 = pneg %p32
      %p150 = pneg %p56
      %p151 = pneg %p53
      %p152 = pneg %p77
      %p153 = pneg %p74
      %p154 = pneg %p103
      %p155 = pneg %p100
      %p156 = scmp.lt.s32.totalorder %s14, 1
      %s157 = scalar_select %p156, %s14, 1
      %s158 = smul.addr %s157, 54
      %s159 = smul.addr %s158, 8
      %s160 = scalar_lea.vmem %s3, %s159
      %p161 = scmp.lt.s32.totalorder %s14, 1
      %s162 = scalar_select %p161, %s14, 1
      %s163 = smul.addr %s162, 32
      %s164 = smul.addr %s163, 8
      %s165 = scalar_lea.vmem %s0, %s164
      %p166 = scmp.lt.s32.totalorder %s14, 1
      %s167 = scalar_select %p166, %s14, 1
      %s168 = smul.addr %s167, 54
      %s169 = smul.addr %s168, 8
      %s170 = scalar_lea.vmem %s3, %s169
      %v171 = vld [vmem:[%s165] sm:$0xff]
      %v172 = vld [vmem:[%s165 + $0x8] sm:$0xff]
      %v173 = vld [vmem:[%s165 + $0x10] sm:$0xff]
      %v174 = vld [vmem:[%s165 + $0x18] sm:$0xff]
      %v175 = vld [vmem:[%s165 + $0x20] sm:$0xff]
      %v176 = vld [vmem:[%s165 + $0x28] sm:$0xff]
      %v177 = vld [vmem:[%s165 + $0x30] sm:$0xff]
      %v178 = vld [vmem:[%s165 + $0x38] sm:$0xff]
      %v179 = vld [vmem:[%s165 + $0x40] sm:$0xff]
      %v180 = vld [vmem:[%s165 + $0x48] sm:$0xff]
      %v181 = vld [vmem:[%s165 + $0x50] sm:$0xff]
      %v182 = vld [vmem:[%s165 + $0x58] sm:$0xff]
      %v183 = vld [vmem:[%s165 + $0x60] sm:$0xff]
      %v184 = vld [vmem:[%s165 + $0x68] sm:$0xff]
      %v185 = vld [vmem:[%s165 + $0x70] sm:$0xff]
      %v186 = vld [vmem:[%s165 + $0x78] sm:$0xff]
      %v187 = vld [vmem:[%s165 + $0x80] sm:$0xff]
      %v188 = vld [vmem:[%s165 + $0x88] sm:$0xff]
      %v189 = vld [vmem:[%s165 + $0x90] sm:$0xff]
      %v190 = vld [vmem:[%s165 + $0x98] sm:$0xff]
      %v191 = vld [vmem:[%s165 + $0xa0] sm:$0xff]
      %v192 = vld [vmem:[%s165 + $0xa8] sm:$0xff]
      %v193 = vld [vmem:[%s165 + $0xb0] sm:$0xff]
      %v194 = vld [vmem:[%s165 + $0xb8] sm:$0xff]
      %v195 = vld [vmem:[%s165 + $0xc0] sm:$0xff]
      %v196 = vld [vmem:[%s165 + $0xc8] sm:$0xff]
      %v197 = vld [vmem:[%s165 + $0xd0] sm:$0xff]
      %v198 = vld [vmem:[%s165 + $0xd8] sm:$0xff]
      %v199 = vld [vmem:[%s165 + $0xe0] sm:$0xff]
      %v200 = vld [vmem:[%s165 + $0xe8] sm:$0xff]
      %v201 = vld [vmem:[%s165 + $0xf0] sm:$0xff]
      %v202 = vld [vmem:[%s165 + $0xf8] sm:$0xff]
      %v203 = vld [vmem:[%s1] sm:$0x1]
      %v205 = vperm.slane %v203, 0
      %v207 = vmul.f32 %v171, %v205
      %v208 = vmul.f32 %v172, %v205
      %v209 = vmul.f32 %v173, %v205
      %v210 = vmul.f32 %v174, %v205
      %v211 = vmul.f32 %v175, %v205
      %v212 = vmul.f32 %v176, %v205
      %v213 = vmul.f32 %v177, %v205
      %v214 = vmul.f32 %v178, %v205
      %v215 = vmul.f32 %v179, %v205
      %v216 = vmul.f32 %v180, %v205
      %v217 = vmul.f32 %v181, %v205
      %v218 = vmul.f32 %v182, %v205
      %v219 = vmul.f32 %v183, %v205
      %v220 = vmul.f32 %v184, %v205
      %v221 = vmul.f32 %v185, %v205
      %v222 = vmul.f32 %v186, %v205
      %v223 = vmul.f32 %v187, %v205
      %v224 = vmul.f32 %v188, %v205
      %v225 = vmul.f32 %v189, %v205
      %v226 = vmul.f32 %v190, %v205
      %v227 = vmul.f32 %v191, %v205
      %v228 = vmul.f32 %v192, %v205
      %v229 = vmul.f32 %v193, %v205
      %v230 = vmul.f32 %v194, %v205
      %v231 = vmul.f32 %v195, %v205
      %v232 = vmul.f32 %v196, %v205
      %v233 = vmul.f32 %v197, %v205
      %v234 = vmul.f32 %v198, %v205
      %v235 = vmul.f32 %v199, %v205
      %v236 = vmul.f32 %v200, %v205
      %v237 = vmul.f32 %v201, %v205
      %v238 = vmul.f32 %v202, %v205
      %v239 = vld [vmem:[%s2] sm:$0x1]
      %v241 = vperm.slane %v239, 0
      %v243 = vadd.f32 %v207, %v241
      %v244 = vadd.f32 %v208, %v241
      %v245 = vadd.f32 %v209, %v241
      %v246 = vadd.f32 %v210, %v241
      %v247 = vadd.f32 %v211, %v241
      %v248 = vadd.f32 %v212, %v241
      %v249 = vadd.f32 %v213, %v241
      %v250 = vadd.f32 %v214, %v241
      %v251 = vadd.f32 %v215, %v241
      %v252 = vadd.f32 %v216, %v241
      %v253 = vadd.f32 %v217, %v241
      %v254 = vadd.f32 %v218, %v241
      %v255 = vadd.f32 %v219, %v241
      %v256 = vadd.f32 %v220, %v241
      %v257 = vadd.f32 %v221, %v241
      %v258 = vadd.f32 %v222, %v241
      %v259 = vadd.f32 %v223, %v241
      %v260 = vadd.f32 %v224, %v241
      %v261 = vadd.f32 %v225, %v241
      %v262 = vadd.f32 %v226, %v241
      %v263 = vadd.f32 %v227, %v241
      %v264 = vadd.f32 %v228, %v241
      %v265 = vadd.f32 %v229, %v241
      %v266 = vadd.f32 %v230, %v241
      %v267 = vadd.f32 %v231, %v241
      %v268 = vadd.f32 %v232, %v241
      %v269 = vadd.f32 %v233, %v241
      %v270 = vadd.f32 %v234, %v241
      %v271 = vadd.f32 %v235, %v241
      %v272 = vadd.f32 %v236, %v241
      %v273 = vadd.f32 %v237, %v241
      %v274 = vadd.f32 %v238, %v241
      %v275 = vmax.f32 %v243, 0.0
      %v276 = vmax.f32 %v244, 0.0
      %v277 = vmax.f32 %v245, 0.0
      %v278 = vmax.f32 %v246, 0.0
      %v279 = vmax.f32 %v247, 0.0
      %v280 = vmax.f32 %v248, 0.0
      %v281 = vmax.f32 %v249, 0.0
      %v282 = vmax.f32 %v250, 0.0
      %v283 = vmax.f32 %v251, 0.0
      %v284 = vmax.f32 %v252, 0.0
      %v285 = vmax.f32 %v253, 0.0
      %v286 = vmax.f32 %v254, 0.0
      %v287 = vmax.f32 %v255, 0.0
      %v288 = vmax.f32 %v256, 0.0
      %v289 = vmax.f32 %v257, 0.0
      %v290 = vmax.f32 %v258, 0.0
      %v291 = vmax.f32 %v259, 0.0
      %v292 = vmax.f32 %v260, 0.0
      %v293 = vmax.f32 %v261, 0.0
      %v294 = vmax.f32 %v262, 0.0
      %v295 = vmax.f32 %v263, 0.0
      %v296 = vmax.f32 %v264, 0.0
      %v297 = vmax.f32 %v265, 0.0
      %v298 = vmax.f32 %v266, 0.0
      %v299 = vmax.f32 %v267, 0.0
      %v300 = vmax.f32 %v268, 0.0
      %v301 = vmax.f32 %v269, 0.0
      %v302 = vmax.f32 %v270, 0.0
      %v303 = vmax.f32 %v271, 0.0
      %v304 = vmax.f32 %v272, 0.0
      %v305 = vmax.f32 %v273, 0.0
      %v306 = vmax.f32 %v274, 0.0
      %307 = vst [vmem:[%s170] sm:$0xff] 0.0
      %308 = vst [vmem:[%s170 + $0x8] sm:$0xff] 0.0
      %309 = vst [vmem:[%s170 + $0x10] sm:$0x3] 0.0
      %310 = vst [vmem:[%s170 + $0x18] sm:$0xff] 0.0
      %311 = vst [vmem:[%s170 + $0x20] sm:$0xff] 0.0
      %312 = vst [vmem:[%s170 + $0x28] sm:$0x3] 0.0
      %313 = vst [vmem:[%s170 + $0x30] sm:$0xff] 0.0
      %314 = vst [vmem:[%s170 + $0x38] sm:$0xff] 0.0
      %315 = vst [vmem:[%s170 + $0x40] sm:$0x3] 0.0
      %316 = vst [vmem:[%s170 + $0x48] sm:$0xff] 0.0
      %317 = vst [vmem:[%s170 + $0x50] sm:$0xff] 0.0
      %318 = vst [vmem:[%s170 + $0x58] sm:$0x3] 0.0
      %319 = vst [vmem:[%s170 + $0x60] sm:$0xff] 0.0
      %320 = vst [vmem:[%s170 + $0x68] sm:$0xff] 0.0
      %321 = vst [vmem:[%s170 + $0x70] sm:$0x3] 0.0
      %322 = vst [vmem:[%s170 + $0x78] sm:$0xff] 0.0
      %323 = vst [vmem:[%s170 + $0x80] sm:$0xff] 0.0
      %324 = vst [vmem:[%s170 + $0x88] sm:$0x3] 0.0
      %325 = vst [vmem:[%s170 + $0x90] sm:$0xff] 0.0
      %326 = vst [vmem:[%s170 + $0x98] sm:$0xff] 0.0
      %327 = vst [vmem:[%s170 + $0xa0] sm:$0x3] 0.0
      %328 = vst [vmem:[%s170 + $0xa8] sm:$0xff] 0.0
      %329 = vst [vmem:[%s170 + $0xb0] sm:$0xff] 0.0
      %330 = vst [vmem:[%s170 + $0xb8] sm:$0x3] 0.0
      %331 = vst [vmem:[%s170 + $0xc0] sm:$0xff] 0.0
      %332 = vst [vmem:[%s170 + $0xc8] sm:$0xff] 0.0
      %333 = vst [vmem:[%s170 + $0xd0] sm:$0x3] 0.0
      %334 = vst [vmem:[%s170 + $0xd8] sm:$0xff] 0.0
      %335 = vst [vmem:[%s170 + $0xe0] sm:$0xff] 0.0
      %336 = vst [vmem:[%s170 + $0xe8] sm:$0x3] 0.0
      %337 = vst [vmem:[%s170 + $0xf0] sm:$0xff] 0.0
      %338 = vst [vmem:[%s170 + $0xf8] sm:$0xff] 0.0
      %339 = vst [vmem:[%s170 + $0x100] sm:$0x3] 0.0
      %340 = vst [vmem:[%s170 + $0x108] sm:$0xff] 0.0
      %341 = vst [vmem:[%s170 + $0x110] sm:$0xff] 0.0
      %342 = vst [vmem:[%s170 + $0x118] sm:$0x3] 0.0
      %343 = vst [vmem:[%s170 + $0x120] sm:$0xff] 0.0
      %344 = vst [vmem:[%s170 + $0x128] sm:$0xff] 0.0
      %345 = vst [vmem:[%s170 + $0x130] sm:$0x3] 0.0
      %346 = vst [vmem:[%s170 + $0x138] sm:$0xff] 0.0
      %347 = vst [vmem:[%s170 + $0x140] sm:$0xff] 0.0
      %348 = vst [vmem:[%s170 + $0x148] sm:$0x3] 0.0
      %349 = vst [vmem:[%s170 + $0x150] sm:$0xff] 0.0
      %350 = vst [vmem:[%s170 + $0x158] sm:$0xff] 0.0
      %351 = vst [vmem:[%s170 + $0x160] sm:$0x3] 0.0
      %352 = vst [vmem:[%s170 + $0x168] sm:$0xff] 0.0
      %353 = vst [vmem:[%s170 + $0x170] sm:$0xff] 0.0
      %354 = vst [vmem:[%s170 + $0x178] sm:$0x3] 0.0
      %355 = vst [vmem:[%s170 + $0x180] sm:$0xff] 0.0
      %356 = vst [vmem:[%s170 + $0x188] sm:$0xff] 0.0
      %357 = vst [vmem:[%s170 + $0x190] sm:$0x3] 0.0
      %358 = vst [vmem:[%s170 + $0x198] sm:$0xff] 0.0
      %359 = vst [vmem:[%s170 + $0x1a0] sm:$0xff] 0.0
      %360 = vst [vmem:[%s170 + $0x1a8] sm:$0x3] 0.0
      %s361 = scalar_lea.vmem %s170, 24
      %362 = vst [vmem:[%s361 + $0x1] sm:$0xff] %v275
      %363 = vst [vmem:[%s361 + $0x9] sm:$0xff] %v276
      %364 = vst [vmem:[%s361 + $0x19] sm:$0xff] %v277
      %365 = vst [vmem:[%s361 + $0x21] sm:$0xff] %v278
      %366 = vst [vmem:[%s361 + $0x31] sm:$0xff] %v279
      %367 = vst [vmem:[%s361 + $0x39] sm:$0xff] %v280
      %368 = vst [vmem:[%s361 + $0x49] sm:$0xff] %v281
      %369 = vst [vmem:[%s361 + $0x51] sm:$0xff] %v282
      %370 = vst [vmem:[%s361 + $0x61] sm:$0xff] %v283
      %371 = vst [vmem:[%s361 + $0x69] sm:$0xff] %v284
      %372 = vst [vmem:[%s361 + $0x79] sm:$0xff] %v285
      %373 = vst [vmem:[%s361 + $0x81] sm:$0xff] %v286
      %374 = vst [vmem:[%s361 + $0x91] sm:$0xff] %v287
      %375 = vst [vmem:[%s361 + $0x99] sm:$0xff] %v288
      %376 = vst [vmem:[%s361 + $0xa9] sm:$0xff] %v289
      %377 = vst [vmem:[%s361 + $0xb1] sm:$0xff] %v290
      %378 = vst [vmem:[%s361 + $0xc1] sm:$0xff] %v291
      %379 = vst [vmem:[%s361 + $0xc9] sm:$0xff] %v292
      %380 = vst [vmem:[%s361 + $0xd9] sm:$0xff] %v293
      %381 = vst [vmem:[%s361 + $0xe1] sm:$0xff] %v294
      %382 = vst [vmem:[%s361 + $0xf1] sm:$0xff] %v295
      %383 = vst [vmem:[%s361 + $0xf9] sm:$0xff] %v296
      %384 = vst [vmem:[%s361 + $0x109] sm:$0xff] %v297
      %385 = vst [vmem:[%s361 + $0x111] sm:$0xff] %v298
      %386 = vst [vmem:[%s361 + $0x121] sm:$0xff] %v299
      %387 = vst [vmem:[%s361 + $0x129] sm:$0xff] %v300
      %388 = vst [vmem:[%s361 + $0x139] sm:$0xff] %v301
      %389 = vst [vmem:[%s361 + $0x141] sm:$0xff] %v302
      %390 = vst [vmem:[%s361 + $0x151] sm:$0xff] %v303
      %391 = vst [vmem:[%s361 + $0x159] sm:$0xff] %v304
      %392 = vst [vmem:[%s361 + $0x169] sm:$0xff] %v305
      %393 = vst [vmem:[%s361 + $0x171] sm:$0xff] %v306
      %p394 = scmp.lt.s32.totalorder %s14, 1
      %s395 = scalar_select %p394, %s14, 1
      %s396 = smul.addr %s395, 54
      %s397 = smul.addr %s396, 8
      %s398 = scalar_lea.vmem %s3, %s397
      // Predicated region
      $region33: #{encoding_block_forward.5} parent=31 // pred_check
        %p399 = pneg %p100
      $region34: #{encoding_block_forward.5} parent=31 // pred_check_branch
        %401 = sbr.rel (%p399) target = $region36
      $region35: #{encoding_block_forward.5} parent=31 // pred_region
        _
      $region36: #{encoding_block_forward.5} parent=31 // pred_fallthru
        _
    $region32: #{encoding_block_forward.5} parent=5 // pred_fallthru
      _
    %p402 = scmp.le.s32.totalorder 2, %s9
    // Predicated region
    $region37: #{encoding_block_forward.5} parent=5 // pred_check
      %p403 = pneg %p402
    $region38: #{encoding_block_forward.5} parent=5 // pred_check_branch
      %405 = sbr.rel (%p403) target = $region40
    $region39: #{encoding_block_forward.5} parent=5 // pred_region
      %s406 = ssub.s32 %s9, 2
      // Predicated region
      $region41: #{encoding_block_forward.5} parent=39 // pred_check
        %p407 = pneg %p106
      $region42: #{encoding_block_forward.5} parent=39 // pred_check_branch
        %409 = sbr.rel (%p407) target = $region44
      $region43: #{encoding_block_forward.5} parent=39 // pred_region
        %p410 = scmp.lt.s32.totalorder %s15, 1
        %s411 = scalar_select %p410, %s15, 1
        %s412 = smul.addr %s411, 54
        %s413 = smul.addr %s412, 8
        %s414 = scalar_lea.vmem %s3, %s413
      $region44: #{encoding_block_forward.5} parent=39 // pred_fallthru
        _
    $region40: #{encoding_block_forward.5} parent=5 // pred_fallthru
      _
  $region6: #{encoding_block_forward.5} parent=0 // loop_footer
    %s13 = sadd.s32 1, %s9
  $region7: #{encoding_block_forward.5} parent=0 // loop_footer_branch
    %8 = sbr.rel target = $region3
  $region8: #{encoding_block_forward.5} parent=0 // loop_exit
    _

// kernel: encoding_block_forward.4
$region0: #{encoding_block_forward.4}
  #allocation0 [shape = 'u32[]', space=smem, size = 0x4, offset = 0x4, fixed_abs, tag = 'smem constant byte address 0x4 - core index']
  #allocation1 [shape = 'u32[72,128]{1,0:T(1,128)}', space=vmem, size = 0x9000, scoped, tag = 'internal scratch']
  %s0 = inlined_call_operand.vmem [shape: f32[2,18,18,128], index: 0, kind: input, shape index: {}]
  %s1 = inlined_call_operand.vmem [shape: f32[1152,128], index: 1, kind: input, shape index: {}]
  %s2 = inlined_call_operand.vmem [shape: f32[2,16,16,128], index: 2, kind: output, shape index: {0}]
  %s3 = inlined_call_operand.vmem [shape: f32[2,2,8,128], index: 3, kind: output, shape index: {1}]
  %s4 = inlined_call_operand.vmem [shape: f32[2,2,8,128], index: 4, kind: output, shape index: {2}]
  %5 = xla_tuple %s2, %s3, %s4
  %s6 = sld [smem:[#allocation0]]
  $region57: #{encoding_block_forward.4} parent=0
    _
  %s8 = ssub.s32 1, %s6
  %s9 = scalar_select 0, %s8, %s6
  loop: start=0, step=1, limit=6
  $region2: #{encoding_block_forward.4} parent=0 // loop_pre_header
    _
  $region3: #{encoding_block_forward.4} parent=0 // loop_header
    %s11 = sphi 0, %s15
    %p12 = scmp.ge.s32.totalorder %s11, 6
    %s18 = sphi 0, %s30
    %s19 = sphi 0, %s26
    %s20 = sphi 0, %s18
    %s21 = sphi 0, %s19
    %s22 = sphi 0, %s20
    %s23 = sphi 0, %s21
    %s33 = sphi 0, %s35
    %s36 = sphi 0, %s33
    %s37 = sphi 0, %s36
    %s53 = sphi 0, %s37
    %s57 = sphi 0, %s57
    %s59 = sphi 0, %s57
    %s60 = sphi 0, %s59
    %s74 = sphi 0, %s60
    %s82 = sphi 0, %s84
    %s85 = sphi 0, %s82
    %s86 = sphi 0, %s85
    %s102 = sphi 0, %s86
    %s110 = sphi 0, %s112
    %s113 = sphi 0, %s110
    %s114 = sphi 0, %s113
    %s130 = sphi 0, %s114
    %s138 = sphi 0, %s140
    %s141 = sphi 0, %s138
    %s142 = sphi 0, %s141
    %s158 = sphi 0, %s142
  $region4: #{encoding_block_forward.4} parent=0 // loop_header_branch
    %14 = sbr.rel (%p12) target = $region8
  $region5: #{encoding_block_forward.4} parent=0 // loop_body
    %s16 = ssub.s32 %s11, 1
    %s17 = ssub.s32 %s11, 2
    %s24 = sadd.s32 1, %s19
    %p25 = scmp.ge.s32.totalorder %s24, 2
    %s26 = scalar_select %p25, 0, %s24
    %s27 = sadd.s32 1, %s18
    %s28 = scalar_select %p25, %s27, %s18
    %p29 = scmp.ge.s32.totalorder %s28, 2
    %s30 = scalar_select %p29, 0, %s28
    %s31 = ssub.s32 %s18, %s30
    %p32 = scmp.eq.s32.totalorder %s31, 0
    %s34 = sadd.s32 %s33, 1
    %s35 = scalar_select %p32, %s33, %s34
    %p38 = pneg %p32
    %p39 = scmp.eq.s32.totalorder %s11, 3
    %p40 = por %p38, %p39
    %p41 = scmp.ne.s32.totalorder %s33, %s36
    %p42 = scmp.eq.s32.totalorder %s11, 0
    %p43 = por %p41, %p42
    %p44 = scmp.ne.s32.totalorder %s33, %s36
    %p45 = scmp.eq.s32.totalorder %s16, 3
    %p46 = por %p44, %p45
    %p47 = scmp.ne.s32.totalorder %s36, %s37
    %p48 = scmp.eq.s32.totalorder %s16, 0
    %p49 = por %p47, %p48
    %p50 = scmp.ne.s32.totalorder %s36, %s37
    %p51 = scmp.eq.s32.totalorder %s17, 3
    %p52 = por %p50, %p51
    %p54 = scmp.ne.s32.totalorder %s37, %s53
    %p55 = scmp.eq.s32.totalorder %s17, 0
    %p56 = por %p54, %p55
    %s58 = sadd.s32 %s57, 1
    %p61 = scmp.eq.s32.totalorder %s11, 3
    %p62 = scmp.ne.s32.totalorder %s57, %s59
    %p63 = scmp.eq.s32.totalorder %s11, 0
    %p64 = por %p62, %p63
    %p65 = scmp.ne.s32.totalorder %s57, %s59
    %p66 = scmp.eq.s32.totalorder %s16, 3
    %p67 = por %p65, %p66
    %p68 = scmp.ne.s32.totalorder %s59, %s60
    %p69 = scmp.eq.s32.totalorder %s16, 0
    %p70 = por %p68, %p69
    %p71 = scmp.ne.s32.totalorder %s59, %s60
    %p72 = scmp.eq.s32.totalorder %s17, 3
    %p73 = por %p71, %p72
    %p75 = scmp.ne.s32.totalorder %s60, %s74
    %p76 = scmp.eq.s32.totalorder %s17, 0
    %p77 = por %p75, %p76
    %s78 = ssub.s32 %s18, %s30
    %s79 = ssub.s32 %s19, %s26
    %s80 = sor.u32 %s78, %s79
    %p81 = scmp.eq.s32.totalorder %s80, 0
    %s83 = sadd.s32 %s82, 1
    %s84 = scalar_select %p81, %s82, %s83
    %p87 = pneg %p81
    %p88 = scmp.eq.s32.totalorder %s11, 3
    %p89 = por %p87, %p88
    %p90 = scmp.ne.s32.totalorder %s82, %s85
    %p91 = scmp.eq.s32.totalorder %s11, 0
    %p92 = por %p90, %p91
    %p93 = scmp.ne.s32.totalorder %s82, %s85
    %p94 = scmp.eq.s32.totalorder %s16, 3
    %p95 = por %p93, %p94
    %p96 = scmp.ne.s32.totalorder %s85, %s86
    %p97 = scmp.eq.s32.totalorder %s16, 0
    %p98 = por %p96, %p97
    %p99 = scmp.ne.s32.totalorder %s85, %s86
    %p100 = scmp.eq.s32.totalorder %s17, 3
    %p101 = por %p99, %p100
    %p103 = scmp.ne.s32.totalorder %s86, %s102
    %p104 = scmp.eq.s32.totalorder %s17, 0
    %p105 = por %p103, %p104
    %s106 = ssub.s32 %s18, %s30
    %s107 = ssub.s32 %s19, %s26
    %s108 = sor.u32 %s106, %s107
    %p109 = scmp.eq.s32.totalorder %s108, 0
    %s111 = sadd.s32 %s110, 1
    %s112 = scalar_select %p109, %s110, %s111
    %p115 = pneg %p109
    %p116 = scmp.eq.s32.totalorder %s11, 3
    %p117 = por %p115, %p116
    %p118 = scmp.ne.s32.totalorder %s110, %s113
    %p119 = scmp.eq.s32.totalorder %s11, 0
    %p120 = por %p118, %p119
    %p121 = scmp.ne.s32.totalorder %s110, %s113
    %p122 = scmp.eq.s32.totalorder %s16, 3
    %p123 = por %p121, %p122
    %p124 = scmp.ne.s32.totalorder %s113, %s114
    %p125 = scmp.eq.s32.totalorder %s16, 0
    %p126 = por %p124, %p125
    %p127 = scmp.ne.s32.totalorder %s113, %s114
    %p128 = scmp.eq.s32.totalorder %s17, 3
    %p129 = por %p127, %p128
    %p131 = scmp.ne.s32.totalorder %s114, %s130
    %p132 = scmp.eq.s32.totalorder %s17, 0
    %p133 = por %p131, %p132
    %s134 = ssub.s32 %s18, %s30
    %s135 = ssub.s32 %s19, %s26
    %s136 = sor.u32 %s134, %s135
    %p137 = scmp.eq.s32.totalorder %s136, 0
    %s139 = sadd.s32 %s138, 1
    %s140 = scalar_select %p137, %s138, %s139
    %p143 = pneg %p137
    %p144 = scmp.eq.s32.totalorder %s11, 3
    %p145 = por %p143, %p144
    %p146 = scmp.ne.s32.totalorder %s138, %s141
    %p147 = scmp.eq.s32.totalorder %s11, 0
    %p148 = por %p146, %p147
    %p149 = scmp.ne.s32.totalorder %s138, %s141
    %p150 = scmp.eq.s32.totalorder %s16, 3
    %p151 = por %p149, %p150
    %p152 = scmp.ne.s32.totalorder %s141, %s142
    %p153 = scmp.eq.s32.totalorder %s16, 0
    %p154 = por %p152, %p153
    %p155 = scmp.ne.s32.totalorder %s141, %s142
    %p156 = scmp.eq.s32.totalorder %s17, 3
    %p157 = por %p155, %p156
    %p159 = scmp.ne.s32.totalorder %s142, %s158
    %p160 = scmp.eq.s32.totalorder %s17, 0
    %p161 = por %p159, %p160
    %p162 = scmp.le.s32.totalorder 1, %s11
    %p163 = scmp.lt.s32.totalorder %s11, 5
    %p164 = pnand %p162, %p163
    %p165 = pneg %p164
    // Predicated region
    $region9: #{encoding_block_forward.4} parent=5 // pred_check
      _
    $region10: #{encoding_block_forward.4} parent=5 // pred_check_branch
      %167 = sbr.rel (%p164) target = $region12
    $region11: #{encoding_block_forward.4} parent=5 // pred_region
      %s168 = ssub.s32 %s11, 1
      // Predicated region
      $region13: #{encoding_block_forward.4} parent=11 // pred_check
        %p169 = pneg %p70
      $region14: #{encoding_block_forward.4} parent=11 // pred_check_branch
        %171 = sbr.rel (%p169) target = $region16
      $region15: #{encoding_block_forward.4} parent=11 // pred_region
        _
      $region16: #{encoding_block_forward.4} parent=11 // pred_fallthru
        _
    $region12: #{encoding_block_forward.4} parent=5 // pred_fallthru
      _
    %p172 = scmp.lt.s32.totalorder %s11, 4
    // Predicated region
    $region17: #{encoding_block_forward.4} parent=5 // pred_check
      %p173 = pneg %p172
    $region18: #{encoding_block_forward.4} parent=5 // pred_check_branch
      %175 = sbr.rel (%p173) target = $region20
    $region19: #{encoding_block_forward.4} parent=5 // pred_region
      // Predicated region
      $region21: #{encoding_block_forward.4} parent=19 // pred_check
        %p176 = pneg %p43
      $region22: #{encoding_block_forward.4} parent=19 // pred_check_branch
        %178 = sbr.rel (%p176) target = $region24
      $region23: #{encoding_block_forward.4} parent=19 // pred_region
        %p179 = scmp.lt.s32.totalorder %s18, 1
        %s180 = scalar_select %p179, %s18, 1
        %s181 = smul.addr %s180, 54
        %s182 = smul.addr %s181, 8
        %s183 = scalar_lea.vmem %s0, %s182
      $region24: #{encoding_block_forward.4} parent=19 // pred_fallthru
        _
    $region20: #{encoding_block_forward.4} parent=5 // pred_fallthru
      _
    %p184 = scmp.le.s32.totalorder 1, %s11
    %p185 = scmp.lt.s32.totalorder %s11, 5
    %p186 = pnand %p184, %p185
    %p187 = pneg %p186
    // Predicated region
    $region25: #{encoding_block_forward.4} parent=5 // pred_check
      _
    $region26: #{encoding_block_forward.4} parent=5 // pred_check_branch
      %189 = sbr.rel (%p186) target = $region28
    $region27: #{encoding_block_forward.4} parent=5 // pred_region
      %s190 = ssub.s32 %s11, 1
      %p191 = scmp.lt.s32.totalorder %s20, 1
      %s192 = scalar_select %p191, %s20, 1
      %s193 = smul.addr %s192, 54
      %s194 = smul.addr %s193, 8
      %s195 = scalar_lea.vmem %s0, %s194
      %p196 = pneg %p49
      %p197 = pneg %p46
      %p198 = pneg %p70
      %p199 = pneg %p67
      %p200 = pneg %p98
      %p201 = pneg %p95
      %s202 = smul.u32 8, %s21
      %p203 = scmp.lt.s32.totalorder %s20, 1
      %s204 = scalar_select %p203, %s20, 1
      %p205 = scmp.lt.s32.totalorder %s202, 15
      %s206 = scalar_select %p205, %s202, 15
      %s207 = smul.addr %s206, 2
      %s208 = smul.addr %s204, 32
      %s209 = sadd.s32 %s207, %s208
      %s210 = smul.addr %s209, 8
      %s211 = scalar_lea.vmem %s2, %s210
      %p212 = pneg %p126
      %p213 = pneg %p123
      %p214 = scmp.lt.s32.totalorder %s20, 1
      %s215 = scalar_select %p214, %s20, 1
      %p216 = scmp.lt.s32.totalorder %s21, 1
      %s217 = scalar_select %p216, %s21, 1
      %s218 = smul.addr %s215, 2
      %s219 = sadd.s32 %s217, %s218
      %s220 = smul.addr %s219, 8
      %s221 = scalar_lea.vmem %s3, %s220
      %p222 = pneg %p154
      %p223 = pneg %p151
      %p224 = scmp.lt.s32.totalorder %s20, 1
      %s225 = scalar_select %p224, %s20, 1
      %p226 = scmp.lt.s32.totalorder %s21, 1
      %s227 = scalar_select %p226, %s21, 1
      %s228 = smul.addr %s225, 2
      %s229 = sadd.s32 %s227, %s228
      %s230 = smul.addr %s229, 8
      %s231 = scalar_lea.vmem %s4, %s230
      %p232 = scmp.lt.s32.totalorder %s20, 1
      %s233 = scalar_select %p232, %s20, 1
      %s234 = smul.addr %s233, 54
      %s235 = smul.addr %s234, 8
      %s236 = scalar_lea.vmem %s0, %s235
      %s237 = smul.u32 8, %s21
      %p238 = scmp.lt.s32.totalorder %s20, 1
      %s239 = scalar_select %p238, %s20, 1
      %p240 = scmp.lt.s32.totalorder %s237, 15
      %s241 = scalar_select %p240, %s237, 15
      %s242 = smul.addr %s241, 2
      %s243 = smul.addr %s239, 32
      %s244 = sadd.s32 %s242, %s243
      %s245 = smul.addr %s244, 8
      %s246 = scalar_lea.vmem %s2, %s245
      %s247 = smul.u32 8, %s21
      %p248 = scmp.lt.s32.totalorder %s20, 1
      %s249 = scalar_select %p248, %s20, 1
      %p250 = scmp.lt.s32.totalorder %s21, 1
      %s251 = scalar_select %p250, %s21, 1
      %s252 = smul.addr %s249, 2
      %s253 = sadd.s32 %s251, %s252
      %s254 = smul.addr %s253, 8
      %s255 = scalar_lea.vmem %s3, %s254
      %p256 = scmp.lt.s32.totalorder %s20, 1
      %s257 = scalar_select %p256, %s20, 1
      %p258 = scmp.lt.s32.totalorder %s21, 1
      %s259 = scalar_select %p258, %s21, 1
      %s260 = smul.addr %s257, 2
      %s261 = sadd.s32 %s259, %s260
      %s262 = smul.addr %s261, 8
      %s263 = scalar_lea.vmem %s4, %s262
      %s264 = smul.u32 %s21, 8
      %s265 = smul.u32 %s264, 24
      %s266 = scalar_lea.vmem %s236, %s265
      %v267 = vld [vmem:[%s266] sm:$0xff]
      %v268 = vld [vmem:[%s266 + $0x8] sm:$0xff]
      %v269 = vld [vmem:[%s266 + $0x10] sm:$0x3]
      %v270 = vld [vmem:[%s266 + $0x18] sm:$0xff]
      %v271 = vld [vmem:[%s266 + $0x20] sm:$0xff]
      %v272 = vld [vmem:[%s266 + $0x28] sm:$0x3]
      %v273 = vld [vmem:[%s266 + $0x30] sm:$0xff]
      %v274 = vld [vmem:[%s266 + $0x38] sm:$0xff]
      %v275 = vld [vmem:[%s266 + $0x40] sm:$0x3]
      %v276 = vld [vmem:[%s266 + $0x48] sm:$0xff]
      %v277 = vld [vmem:[%s266 + $0x50] sm:$0xff]
      %v278 = vld [vmem:[%s266 + $0x58] sm:$0x3]
      %v279 = vld [vmem:[%s266 + $0x60] sm:$0xff]
      %v280 = vld [vmem:[%s266 + $0x68] sm:$0xff]
      %v281 = vld [vmem:[%s266 + $0x70] sm:$0x3]
      %v282 = vld [vmem:[%s266 + $0x78] sm:$0xff]
      %v283 = vld [vmem:[%s266 + $0x80] sm:$0xff]
      %v284 = vld [vmem:[%s266 + $0x88] sm:$0x3]
      %v285 = vld [vmem:[%s266 + $0x90] sm:$0xff]
      %v286 = vld [vmem:[%s266 + $0x98] sm:$0xff]
      %v287 = vld [vmem:[%s266 + $0xa0] sm:$0x3]
      %v288 = vld [vmem:[%s266 + $0xa8] sm:$0xff]
      %v289 = vld [vmem:[%s266 + $0xb0] sm:$0xff]
      %v290 = vld [vmem:[%s266 + $0xb8] sm:$0x3]
      %v291 = vld [vmem:[%s266 + $0xc0] sm:$0xff]
      %v292 = vld [vmem:[%s266 + $0xc8] sm:$0xff]
      %v293 = vld [vmem:[%s266 + $0xd0] sm:$0x3]
      %v294 = vld [vmem:[%s266 + $0xd8] sm:$0xff]
      %v295 = vld [vmem:[%s266 + $0xe0] sm:$0xff]
      %v296 = vld [vmem:[%s266 + $0xe8] sm:$0x3]
      %v297 = vld [vmem:[%s1] sm:$0xff]
      %v298 = vld [vmem:[%s1 + $0x8] sm:$0xff]
      %v299 = vld [vmem:[%s1 + $0x10] sm:$0xff]
      %v300 = vld [vmem:[%s1 + $0x18] sm:$0xff]
      %v301 = vld [vmem:[%s1 + $0x20] sm:$0xff]
      %v302 = vld [vmem:[%s1 + $0x28] sm:$0xff]
      %v303 = vld [vmem:[%s1 + $0x30] sm:$0xff]
      %v304 = vld [vmem:[%s1 + $0x38] sm:$0xff]
      %v305 = vld [vmem:[%s1 + $0x40] sm:$0xff]
      %v306 = vld [vmem:[%s1 + $0x48] sm:$0xff]
      %v307 = vld [vmem:[%s1 + $0x50] sm:$0xff]
      %v308 = vld [vmem:[%s1 + $0x58] sm:$0xff]
      %v309 = vld [vmem:[%s1 + $0x60] sm:$0xff]
      %v310 = vld [vmem:[%s1 + $0x68] sm:$0xff]
      %v311 = vld [vmem:[%s1 + $0x70] sm:$0xff]
      %v312 = vld [vmem:[%s1 + $0x78] sm:$0xff]
      %vm337 = vcmask 1046528
      %v338 = vrot.slane %v267, 1
      %v339 = vrot.slane %v268, 1
      %v340 = vsel %vm337, %v338, %v339
      %v341 = vrot.slane %v269, 1
      %v342 = vsel %vm337, %v339, %v341
      %v343 = vrot.slane %v270, 1
      %v344 = vrot.slane %v271, 1
      %v345 = vsel %vm337, %v343, %v344
      %v346 = vrot.slane %v272, 1
      %v347 = vsel %vm337, %v344, %v346
      %v348 = vrot.slane %v273, 1
      %v349 = vrot.slane %v274, 1
      %v350 = vsel %vm337, %v348, %v349
      %v351 = vrot.slane %v275, 1
      %v352 = vsel %vm337, %v349, %v351
      %v353 = vrot.slane %v276, 1
      %v354 = vrot.slane %v277, 1
      %v355 = vsel %vm337, %v353, %v354
      %v356 = vrot.slane %v278, 1
      %v357 = vsel %vm337, %v354, %v356
      %v358 = vrot.slane %v279, 1
      %v359 = vrot.slane %v280, 1
      %v360 = vsel %vm337, %v358, %v359
      %v361 = vrot.slane %v281, 1
      %v362 = vsel %vm337, %v359, %v361
      %v363 = vrot.slane %v282, 1
      %v364 = vrot.slane %v283, 1
      %v365 = vsel %vm337, %v363, %v364
      %v366 = vrot.slane %v284, 1
      %v367 = vsel %vm337, %v364, %v366
      %v368 = vrot.slane %v285, 1
      %v369 = vrot.slane %v286, 1
      %v370 = vsel %vm337, %v368, %v369
      %v371 = vrot.slane %v287, 1
      %v372 = vsel %vm337, %v369, %v371
      %v373 = vrot.slane %v288, 1
      %v374 = vrot.slane %v289, 1
      %v375 = vsel %vm337, %v373, %v374
      %v376 = vrot.slane %v290, 1
      %v377 = vsel %vm337, %v374, %v376
      %v394 = vld [vmem:[%s1 + $0x80] sm:$0xff]
      %v395 = vld [vmem:[%s1 + $0x88] sm:$0xff]
      %v396 = vld [vmem:[%s1 + $0x90] sm:$0xff]
      %v397 = vld [vmem:[%s1 + $0x98] sm:$0xff]
      %v398 = vld [vmem:[%s1 + $0xa0] sm:$0xff]
      %v399 = vld [vmem:[%s1 + $0xa8] sm:$0xff]
      %v400 = vld [vmem:[%s1 + $0xb0] sm:$0xff]
      %v401 = vld [vmem:[%s1 + $0xb8] sm:$0xff]
      %v402 = vld [vmem:[%s1 + $0xc0] sm:$0xff]
      %v403 = vld [vmem:[%s1 + $0xc8] sm:$0xff]
      %v404 = vld [vmem:[%s1 + $0xd0] sm:$0xff]
      %v405 = vld [vmem:[%s1 + $0xd8] sm:$0xff]
      %v406 = vld [vmem:[%s1 + $0xe0] sm:$0xff]
      %v407 = vld [vmem:[%s1 + $0xe8] sm:$0xff]
      %v408 = vld [vmem:[%s1 + $0xf0] sm:$0xff]
      %v409 = vld [vmem:[%s1 + $0xf8] sm:$0xff]
      %410 = vmatpush.msra.mxu0 %v409
      %411 = vmatpush.msra.mxu0 %v408
      %412 = vmatpush.msra.mxu0 %v407
      %413 = vmatpush.msra.mxu0 %v406
      %414 = vmatpush.msra.mxu0 %v405
      %415 = vmatpush.msra.mxu0 %v404
      %416 = vmatpush.msra.mxu0 %v403
      %417 = vmatpush.msra.mxu0 %v402
      %418 = vmatpush.msra.mxu0 %v401
      %419 = vmatpush.msra.mxu0 %v400
      %420 = vmatpush.msra.mxu0 %v399
      %421 = vmatpush.msra.mxu0 %v398
      %422 = vmatpush.msra.mxu0 %v397
      %423 = vmatpush.msra.mxu0 %v396
      %424 = vmatpush.msra.mxu0 %v395
      %425 = vmatpush.msra.mxu0 %v394
      %426 = vmatmul.f32.gmra.mxu0 %v340
      %v427 = vpop.f32.mrf.mxu0
      %v428 = vadd.f32 0.0, %v427
      %429 = vmatmul.f32.gmra.mxu0 %v342
      %v430 = vpop.f32.mrf.mxu0
      %v431 = vadd.f32 0.0, %v430
      %432 = vmatmul.f32.gmra.mxu0 %v345
      %v433 = vpop.f32.mrf.mxu0
      %v434 = vadd.f32 0.0, %v433
      %435 = vmatmul.f32.gmra.mxu0 %v347
      %v436 = vpop.f32.mrf.mxu0
      %v437 = vadd.f32 0.0, %v436
      %438 = vmatmul.f32.gmra.mxu0 %v350
      %v439 = vpop.f32.mrf.mxu0
      %v440 = vadd.f32 0.0, %v439
      %441 = vmatmul.f32.gmra.mxu0 %v352
      %v442 = vpop.f32.mrf.mxu0
      %v443 = vadd.f32 0.0, %v442
      %444 = vmatmul.f32.gmra.mxu0 %v355
      %v445 = vpop.f32.mrf.mxu0
      %v446 = vadd.f32 0.0, %v445
      %447 = vmatmul.f32.gmra.mxu0 %v357
      %v448 = vpop.f32.mrf.mxu0
      %v449 = vadd.f32 0.0, %v448
      %450 = vmatmul.f32.gmra.mxu0 %v360
      %v451 = vpop.f32.mrf.mxu0
      %v452 = vadd.f32 0.0, %v451
      %453 = vmatmul.f32.gmra.mxu0 %v362
      %v454 = vpop.f32.mrf.mxu0
      %v455 = vadd.f32 0.0, %v454
      %456 = vmatmul.f32.gmra.mxu0 %v365
      %v457 = vpop.f32.mrf.mxu0
      %v458 = vadd.f32 0.0, %v457
      %459 = vmatmul.f32.gmra.mxu0 %v367
      %v460 = vpop.f32.mrf.mxu0
      %v461 = vadd.f32 0.0, %v460
      %462 = vmatmul.f32.gmra.mxu0 %v370
      %v463 = vpop.f32.mrf.mxu0
      %v464 = vadd.f32 0.0, %v463
      %465 = vmatmul.f32.gmra.mxu0 %v372
      %v466 = vpop.f32.mrf.mxu0
      %v467 = vadd.f32 0.0, %v466
      %468 = vmatmul.f32.gmra.mxu0 %v375
      %v469 = vpop.f32.mrf.mxu0
      %v470 = vadd.f32 0.0, %v469
      %471 = vmatmul.f32.gmra.mxu0 %v377
      %v472 = vpop.f32.mrf.mxu0
      %v473 = vadd.f32 0.0, %v472
      %474 = vdwg.mxu0
      %475 = vmatpush.msra.mxu0 %v312
      %476 = vmatpush.msra.mxu0 %v311
      %477 = vmatpush.msra.mxu0 %v310
      %478 = vmatpush.msra.mxu0 %v309
      %479 = vmatpush.msra.mxu0 %v308
      %480 = vmatpush.msra.mxu0 %v307
      %481 = vmatpush.msra.mxu0 %v306
      %482 = vmatpush.msra.mxu0 %v305
      %483 = vmatpush.msra.mxu0 %v304
      %484 = vmatpush.msra.mxu0 %v303
      %485 = vmatpush.msra.mxu0 %v302
      %486 = vmatpush.msra.mxu0 %v301
      %487 = vmatpush.msra.mxu0 %v300
      %488 = vmatpush.msra.mxu0 %v299
      %489 = vmatpush.msra.mxu0 %v298
      %490 = vmatpush.msra.mxu0 %v297
      %491 = vmatmul.f32.gmra.mxu0 %v267
      %v492 = vpop.f32.mrf.mxu0
      %v493 = vadd.f32 %v428, %v492
      %494 = vmatmul.f32.gmra.mxu0 %v268
      %v495 = vpop.f32.mrf.mxu0
      %v496 = vadd.f32 %v431, %v495
      %497 = vmatmul.f32.gmra.mxu0 %v270
      %v498 = vpop.f32.mrf.mxu0
      %v499 = vadd.f32 %v434, %v498
      %500 = vmatmul.f32.gmra.mxu0 %v271
      %v501 = vpop.f32.mrf.mxu0
      %v502 = vadd.f32 %v437, %v501
      %503 = vmatmul.f32.gmra.mxu0 %v273
      %v504 = vpop.f32.mrf.mxu0
      %v505 = vadd.f32 %v440, %v504
      %506 = vmatmul.f32.gmra.mxu0 %v274
      %v507 = vpop.f32.mrf.mxu0
      %v508 = vadd.f32 %v443, %v507
      %509 = vmatmul.f32.gmra.mxu0 %v276
      %v510 = vpop.f32.mrf.mxu0
      %v511 = vadd.f32 %v446, %v510
      %512 = vmatmul.f32.gmra.mxu0 %v277
      %v513 = vpop.f32.mrf.mxu0
      %v514 = vadd.f32 %v449, %v513
      %515 = vmatmul.f32.gmra.mxu0 %v279
      %v516 = vpop.f32.mrf.mxu0
      %v517 = vadd.f32 %v452, %v516
      %518 = vmatmul.f32.gmra.mxu0 %v280
      %v519 = vpop.f32.mrf.mxu0
      %v520 = vadd.f32 %v455, %v519
      %521 = vmatmul.f32.gmra.mxu0 %v282
      %v522 = vpop.f32.mrf.mxu0
      %v523 = vadd.f32 %v458, %v522
      %524 = vmatmul.f32.gmra.mxu0 %v283
      %v525 = vpop.f32.mrf.mxu0
      %v526 = vadd.f32 %v461, %v525
      %527 = vmatmul.f32.gmra.mxu0 %v285
      %v528 = vpop.f32.mrf.mxu0
      %v529 = vadd.f32 %v464, %v528
      %530 = vmatmul.f32.gmra.mxu0 %v286
      %v531 = vpop.f32.mrf.mxu0
      %v532 = vadd.f32 %v467, %v531
      %533 = vmatmul.f32.gmra.mxu0 %v288
      %v534 = vpop.f32.mrf.mxu0
      %v535 = vadd.f32 %v470, %v534
      %536 = vmatmul.f32.gmra.mxu0 %v289
      %v537 = vpop.f32.mrf.mxu0
      %v538 = vadd.f32 %v473, %v537
      %539 = vdwg.mxu0
      %vm540 = vcmask 1045504
      %v541 = vrot.slane %v267, 2
      %v542 = vrot.slane %v268, 2
      %v543 = vsel %vm540, %v541, %v542
      %v544 = vrot.slane %v269, 2
      %v545 = vsel %vm540, %v542, %v544
      %v546 = vrot.slane %v270, 2
      %v547 = vrot.slane %v271, 2
      %v548 = vsel %vm540, %v546, %v547
      %v549 = vrot.slane %v272, 2
      %v550 = vsel %vm540, %v547, %v549
      %v551 = vrot.slane %v273, 2
      %v552 = vrot.slane %v274, 2
      %v553 = vsel %vm540, %v551, %v552
      %v554 = vrot.slane %v275, 2
      %v555 = vsel %vm540, %v552, %v554
      %v556 = vrot.slane %v276, 2
      %v557 = vrot.slane %v277, 2
      %v558 = vsel %vm540, %v556, %v557
      %v559 = vrot.slane %v278, 2
      %v560 = vsel %vm540, %v557, %v559
      %v561 = vrot.slane %v279, 2
      %v562 = vrot.slane %v280, 2
      %v563 = vsel %vm540, %v561, %v562
      %v564 = vrot.slane %v281, 2
      %v565 = vsel %vm540, %v562, %v564
      %v566 = vrot.slane %v282, 2
      %v567 = vrot.slane %v283, 2
      %v568 = vsel %vm540, %v566, %v567
      %v569 = vrot.slane %v284, 2
      %v570 = vsel %vm540, %v567, %v569
      %v571 = vrot.slane %v285, 2
      %v572 = vrot.slane %v286, 2
      %v573 = vsel %vm540, %v571, %v572
      %v574 = vrot.slane %v287, 2
      %v575 = vsel %vm540, %v572, %v574
      %v576 = vrot.slane %v288, 2
      %v577 = vrot.slane %v289, 2
      %v578 = vsel %vm540, %v576, %v577
      %v579 = vrot.slane %v290, 2
      %v580 = vsel %vm540, %v577, %v579
      %v597 = vld [vmem:[%s1 + $0x100] sm:$0xff]
      %v598 = vld [vmem:[%s1 + $0x108] sm:$0xff]
      %v599 = vld [vmem:[%s1 + $0x110] sm:$0xff]
      %v600 = vld [vmem:[%s1 + $0x118] sm:$0xff]
      %v601 = vld [vmem:[%s1 + $0x120] sm:$0xff]
      %v602 = vld [vmem:[%s1 + $0x128] sm:$0xff]
      %v603 = vld [vmem:[%s1 + $0x130] sm:$0xff]
      %v604 = vld [vmem:[%s1 + $0x138] sm:$0xff]
      %v605 = vld [vmem:[%s1 + $0x140] sm:$0xff]
      %v606 = vld [vmem:[%s1 + $0x148] sm:$0xff]
      %v607 = vld [vmem:[%s1 + $0x150] sm:$0xff]
      %v608 = vld [vmem:[%s1 + $0x158] sm:$0xff]
      %v609 = vld [vmem:[%s1 + $0x160] sm:$0xff]
      %v610 = vld [vmem:[%s1 + $0x168] sm:$0xff]
      %v611 = vld [vmem:[%s1 + $0x170] sm:$0xff]
      %v612 = vld [vmem:[%s1 + $0x178] sm:$0xff]
      %613 = vmatpush.msra.mxu0 %v612
      %614 = vmatpush.msra.mxu0 %v611
      %615 = vmatpush.msra.mxu0 %v610
      %616 = vmatpush.msra.mxu0 %v609
      %617 = vmatpush.msra.mxu0 %v608
      %618 = vmatpush.msra.mxu0 %v607
      %619 = vmatpush.msra.mxu0 %v606
      %620 = vmatpush.msra.mxu0 %v605
      %621 = vmatpush.msra.mxu0 %v604
      %622 = vmatpush.msra.mxu0 %v603
      %623 = vmatpush.msra.mxu0 %v602
      %624 = vmatpush.msra.mxu0 %v601
      %625 = vmatpush.msra.mxu0 %v600
      %626 = vmatpush.msra.mxu0 %v599
      %627 = vmatpush.msra.mxu0 %v598
      %628 = vmatpush.msra.mxu0 %v597
      %629 = vmatmul.f32.gmra.mxu0 %v543
      %v630 = vpop.f32.mrf.mxu0
      %v631 = vadd.f32 0.0, %v630
      %632 = vmatmul.f32.gmra.mxu0 %v545
      %v633 = vpop.f32.mrf.mxu0
      %v634 = vadd.f32 0.0, %v633
      %635 = vmatmul.f32.gmra.mxu0 %v548
      %v636 = vpop.f32.mrf.mxu0
      %v637 = vadd.f32 0.0, %v636
      %638 = vmatmul.f32.gmra.mxu0 %v550
      %v639 = vpop.f32.mrf.mxu0
      %v640 = vadd.f32 0.0, %v639
      %641 = vmatmul.f32.gmra.mxu0 %v553
      %v642 = vpop.f32.mrf.mxu0
      %v643 = vadd.f32 0.0, %v642
      %644 = vmatmul.f32.gmra.mxu0 %v555
      %v645 = vpop.f32.mrf.mxu0
      %v646 = vadd.f32 0.0, %v645
      %647 = vmatmul.f32.gmra.mxu0 %v558
      %v648 = vpop.f32.mrf.mxu0
      %v649 = vadd.f32 0.0, %v648
      %650 = vmatmul.f32.gmra.mxu0 %v560
      %v651 = vpop.f32.mrf.mxu0
      %v652 = vadd.f32 0.0, %v651
      %653 = vmatmul.f32.gmra.mxu0 %v563
      %v654 = vpop.f32.mrf.mxu0
      %v655 = vadd.f32 0.0, %v654
      %656 = vmatmul.f32.gmra.mxu0 %v565
      %v657 = vpop.f32.mrf.mxu0
      %v658 = vadd.f32 0.0, %v657
      %659 = vmatmul.f32.gmra.mxu0 %v568
      %v660 = vpop.f32.mrf.mxu0
      %v661 = vadd.f32 0.0, %v660
      %662 = vmatmul.f32.gmra.mxu0 %v570
      %v663 = vpop.f32.mrf.mxu0
      %v664 = vadd.f32 0.0, %v663
      %665 = vmatmul.f32.gmra.mxu0 %v573
      %v666 = vpop.f32.mrf.mxu0
      %v667 = vadd.f32 0.0, %v666
      %668 = vmatmul.f32.gmra.mxu0 %v575
      %v669 = vpop.f32.mrf.mxu0
      %v670 = vadd.f32 0.0, %v669
      %671 = vmatmul.f32.gmra.mxu0 %v578
      %v672 = vpop.f32.mrf.mxu0
      %v673 = vadd.f32 0.0, %v672
      %674 = vmatmul.f32.gmra.mxu0 %v580
      %v675 = vpop.f32.mrf.mxu0
      %v676 = vadd.f32 0.0, %v675
      %677 = vdwg.mxu0
      %v678 = vadd.f32 %v493, %v631
      %v679 = vadd.f32 %v496, %v634
      %v680 = vadd.f32 %v499, %v637
      %v681 = vadd.f32 %v502, %v640
      %v682 = vadd.f32 %v505, %v643
      %v683 = vadd.f32 %v508, %v646
      %v684 = vadd.f32 %v511, %v649
      %v685 = vadd.f32 %v514, %v652
      %v686 = vadd.f32 %v517, %v655
      %v687 = vadd.f32 %v520, %v658
      %v688 = vadd.f32 %v523, %v661
      %v689 = vadd.f32 %v526, %v664
      %v690 = vadd.f32 %v529, %v667
      %v691 = vadd.f32 %v532, %v670
      %v692 = vadd.f32 %v535, %v673
      %v693 = vadd.f32 %v538, %v676
      %v694 = vld [vmem:[%s1 + $0x180] sm:$0xff]
      %v695 = vld [vmem:[%s1 + $0x188] sm:$0xff]
      %v696 = vld [vmem:[%s1 + $0x190] sm:$0xff]
      %v697 = vld [vmem:[%s1 + $0x198] sm:$0xff]
      %v698 = vld [vmem:[%s1 + $0x1a0] sm:$0xff]
      %v699 = vld [vmem:[%s1 + $0x1a8] sm:$0xff]
      %v700 = vld [vmem:[%s1 + $0x1b0] sm:$0xff]
      %v701 = vld [vmem:[%s1 + $0x1b8] sm:$0xff]
      %v702 = vld [vmem:[%s1 + $0x1c0] sm:$0xff]
      %v703 = vld [vmem:[%s1 + $0x1c8] sm:$0xff]
      %v704 = vld [vmem:[%s1 + $0x1d0] sm:$0xff]
      %v705 = vld [vmem:[%s1 + $0x1d8] sm:$0xff]
      %v706 = vld [vmem:[%s1 + $0x1e0] sm:$0xff]
      %v707 = vld [vmem:[%s1 + $0x1e8] sm:$0xff]
      %v708 = vld [vmem:[%s1 + $0x1f0] sm:$0xff]
      %v709 = vld [vmem:[%s1 + $0x1f8] sm:$0xff]
      %710 = vmatpush.msra.mxu0 %v709
      %711 = vmatpush.msra.mxu0 %v708
      %712 = vmatpush.msra.mxu0 %v707
      %713 = vmatpush.msra.mxu0 %v706
      %714 = vmatpush.msra.mxu0 %v705
      %715 = vmatpush.msra.mxu0 %v704
      %716 = vmatpush.msra.mxu0 %v703
      %717 = vmatpush.msra.mxu0 %v702
      %718 = vmatpush.msra.mxu0 %v701
      %719 = vmatpush.msra.mxu0 %v700
      %720 = vmatpush.msra.mxu0 %v699
      %721 = vmatpush.msra.mxu0 %v698
      %722 = vmatpush.msra.mxu0 %v697
      %723 = vmatpush.msra.mxu0 %v696
      %724 = vmatpush.msra.mxu0 %v695
      %725 = vmatpush.msra.mxu0 %v694
      %726 = vmatmul.f32.gmra.mxu0 %v270
      %v727 = vpop.f32.mrf.mxu0
      %v728 = vadd.f32 0.0, %v727
      %729 = vmatmul.f32.gmra.mxu0 %v271
      %v730 = vpop.f32.mrf.mxu0
      %v731 = vadd.f32 0.0, %v730
      %732 = vmatmul.f32.gmra.mxu0 %v273
      %v733 = vpop.f32.mrf.mxu0
      %v734 = vadd.f32 0.0, %v733
      %735 = vmatmul.f32.gmra.mxu0 %v274
      %v736 = vpop.f32.mrf.mxu0
      %v737 = vadd.f32 0.0, %v736
      %738 = vmatmul.f32.gmra.mxu0 %v276
      %v739 = vpop.f32.mrf.mxu0
      %v740 = vadd.f32 0.0, %v739
      %741 = vmatmul.f32.gmra.mxu0 %v277
      %v742 = vpop.f32.mrf.mxu0
      %v743 = vadd.f32 0.0, %v742
      %744 = vmatmul.f32.gmra.mxu0 %v279
      %v745 = vpop.f32.mrf.mxu0
      %v746 = vadd.f32 0.0, %v745
      %747 = vmatmul.f32.gmra.mxu0 %v280
      %v748 = vpop.f32.mrf.mxu0
      %v749 = vadd.f32 0.0, %v748
      %750 = vmatmul.f32.gmra.mxu0 %v282
      %v751 = vpop.f32.mrf.mxu0
      %v752 = vadd.f32 0.0, %v751
      %753 = vmatmul.f32.gmra.mxu0 %v283
      %v754 = vpop.f32.mrf.mxu0
      %v755 = vadd.f32 0.0, %v754
      %756 = vmatmul.f32.gmra.mxu0 %v285
      %v757 = vpop.f32.mrf.mxu0
      %v758 = vadd.f32 0.0, %v757
      %759 = vmatmul.f32.gmra.mxu0 %v286
      %v760 = vpop.f32.mrf.mxu0
      %v761 = vadd.f32 0.0, %v760
      %762 = vmatmul.f32.gmra.mxu0 %v288
      %v763 = vpop.f32.mrf.mxu0
      %v764 = vadd.f32 0.0, %v763
      %765 = vmatmul.f32.gmra.mxu0 %v289
      %v766 = vpop.f32.mrf.mxu0
      %v767 = vadd.f32 0.0, %v766
      %768 = vmatmul.f32.gmra.mxu0 %v291
      %v769 = vpop.f32.mrf.mxu0
      %v770 = vadd.f32 0.0, %v769
      %771 = vmatmul.f32.gmra.mxu0 %v292
      %v772 = vpop.f32.mrf.mxu0
      %v773 = vadd.f32 0.0, %v772
      %774 = vdwg.mxu0
      %v775 = vadd.f32 %v678, %v728
      %v776 = vadd.f32 %v679, %v731
      %v777 = vadd.f32 %v680, %v734
      %v778 = vadd.f32 %v681, %v737
      %v779 = vadd.f32 %v682, %v740
      %v780 = vadd.f32 %v683, %v743
      %v781 = vadd.f32 %v684, %v746
      %v782 = vadd.f32 %v685, %v749
      %v783 = vadd.f32 %v686, %v752
      %v784 = vadd.f32 %v687, %v755
      %v785 = vadd.f32 %v688, %v758
      %v786 = vadd.f32 %v689, %v761
      %v787 = vadd.f32 %v690, %v764
      %v788 = vadd.f32 %v691, %v767
      %v789 = vadd.f32 %v692, %v770
      %v790 = vadd.f32 %v693, %v773
      %v794 = vrot.slane %v291, 1
      %v795 = vrot.slane %v292, 1
      %v796 = vsel %vm337, %v794, %v795
      %v797 = vrot.slane %v293, 1
      %v798 = vsel %vm337, %v795, %v797
      %v801 = vld [vmem:[%s1 + $0x200] sm:$0xff]
      %v802 = vld [vmem:[%s1 + $0x208] sm:$0xff]
      %v803 = vld [vmem:[%s1 + $0x210] sm:$0xff]
      %v804 = vld [vmem:[%s1 + $0x218] sm:$0xff]
      %v805 = vld [vmem:[%s1 + $0x220] sm:$0xff]
      %v806 = vld [vmem:[%s1 + $0x228] sm:$0xff]
      %v807 = vld [vmem:[%s1 + $0x230] sm:$0xff]
      %v808 = vld [vmem:[%s1 + $0x238] sm:$0xff]
      %v809 = vld [vmem:[%s1 + $0x240] sm:$0xff]
      %v810 = vld [vmem:[%s1 + $0x248] sm:$0xff]
      %v811 = vld [vmem:[%s1 + $0x250] sm:$0xff]
      %v812 = vld [vmem:[%s1 + $0x258] sm:$0xff]
      %v813 = vld [vmem:[%s1 + $0x260] sm:$0xff]
      %v814 = vld [vmem:[%s1 + $0x268] sm:$0xff]
      %v815 = vld [vmem:[%s1 + $0x270] sm:$0xff]
      %v816 = vld [vmem:[%s1 + $0x278] sm:$0xff]
      %817 = vmatpush.msra.mxu0 %v816
      %818 = vmatpush.msra.mxu0 %v815
      %819 = vmatpush.msra.mxu0 %v814
      %820 = vmatpush.msra.mxu0 %v813
      %821 = vmatpush.msra.mxu0 %v812
      %822 = vmatpush.msra.mxu0 %v811
      %823 = vmatpush.msra.mxu0 %v810
      %824 = vmatpush.msra.mxu0 %v809
      %825 = vmatpush.msra.mxu0 %v808
      %826 = vmatpush.msra.mxu0 %v807
      %827 = vmatpush.msra.mxu0 %v806
      %828 = vmatpush.msra.mxu0 %v805
      %829 = vmatpush.msra.mxu0 %v804
      %830 = vmatpush.msra.mxu0 %v803
      %831 = vmatpush.msra.mxu0 %v802
      %832 = vmatpush.msra.mxu0 %v801
      %833 = vmatmul.f32.gmra.mxu0 %v345
      %v834 = vpop.f32.mrf.mxu0
      %v835 = vadd.f32 0.0, %v834
      %836 = vmatmul.f32.gmra.mxu0 %v347
      %v837 = vpop.f32.mrf.mxu0
      %v838 = vadd.f32 0.0, %v837
      %839 = vmatmul.f32.gmra.mxu0 %v350
      %v840 = vpop.f32.mrf.mxu0
      %v841 = vadd.f32 0.0, %v840
      %842 = vmatmul.f32.gmra.mxu0 %v352
      %v843 = vpop.f32.mrf.mxu0
      %v844 = vadd.f32 0.0, %v843
      %845 = vmatmul.f32.gmra.mxu0 %v355
      %v846 = vpop.f32.mrf.mxu0
      %v847 = vadd.f32 0.0, %v846
      %848 = vmatmul.f32.gmra.mxu0 %v357
      %v849 = vpop.f32.mrf.mxu0
      %v850 = vadd.f32 0.0, %v849
      %851 = vmatmul.f32.gmra.mxu0 %v360
      %v852 = vpop.f32.mrf.mxu0
      %v853 = vadd.f32 0.0, %v852
      %854 = vmatmul.f32.gmra.mxu0 %v362
      %v855 = vpop.f32.mrf.mxu0
      %v856 = vadd.f32 0.0, %v855
      %857 = vmatmul.f32.gmra.mxu0 %v365
      %v858 = vpop.f32.mrf.mxu0
      %v859 = vadd.f32 0.0, %v858
      %860 = vmatmul.f32.gmra.mxu0 %v367
      %v861 = vpop.f32.mrf.mxu0
      %v862 = vadd.f32 0.0, %v861
      %863 = vmatmul.f32.gmra.mxu0 %v370
      %v864 = vpop.f32.mrf.mxu0
      %v865 = vadd.f32 0.0, %v864
      %866 = vmatmul.f32.gmra.mxu0 %v372
      %v867 = vpop.f32.mrf.mxu0
      %v868 = vadd.f32 0.0, %v867
      %869 = vmatmul.f32.gmra.mxu0 %v375
      %v870 = vpop.f32.mrf.mxu0
      %v871 = vadd.f32 0.0, %v870
      %872 = vmatmul.f32.gmra.mxu0 %v377
      %v873 = vpop.f32.mrf.mxu0
      %v874 = vadd.f32 0.0, %v873
      %875 = vmatmul.f32.gmra.mxu0 %v796
      %v876 = vpop.f32.mrf.mxu0
      %v877 = vadd.f32 0.0, %v876
      %878 = vmatmul.f32.gmra.mxu0 %v798
      %v879 = vpop.f32.mrf.mxu0
      %v880 = vadd.f32 0.0, %v879
      %881 = vdwg.mxu0
      %v882 = vadd.f32 %v775, %v835
      %v883 = vadd.f32 %v776, %v838
      %v884 = vadd.f32 %v777, %v841
      %v885 = vadd.f32 %v778, %v844
      %v886 = vadd.f32 %v779, %v847
      %v887 = vadd.f32 %v780, %v850
      %v888 = vadd.f32 %v781, %v853
      %v889 = vadd.f32 %v782, %v856
      %v890 = vadd.f32 %v783, %v859
      %v891 = vadd.f32 %v784, %v862
      %v892 = vadd.f32 %v785, %v865
      %v893 = vadd.f32 %v786, %v868
      %v894 = vadd.f32 %v787, %v871
      %v895 = vadd.f32 %v788, %v874
      %v896 = vadd.f32 %v789, %v877
      %v897 = vadd.f32 %v790, %v880
      %v898 = vrot.slane %v291, 2
      %v899 = vrot.slane %v292, 2
      %v900 = vsel %vm540, %v898, %v899
      %v901 = vrot.slane %v293, 2
      %v902 = vsel %vm540, %v899, %v901
      %v905 = vld [vmem:[%s1 + $0x280] sm:$0xff]
      %v906 = vld [vmem:[%s1 + $0x288] sm:$0xff]
      %v907 = vld [vmem:[%s1 + $0x290] sm:$0xff]
      %v908 = vld [vmem:[%s1 + $0x298] sm:$0xff]
      %v909 = vld [vmem:[%s1 + $0x2a0] sm:$0xff]
      %v910 = vld [vmem:[%s1 + $0x2a8] sm:$0xff]
      %v911 = vld [vmem:[%s1 + $0x2b0] sm:$0xff]
      %v912 = vld [vmem:[%s1 + $0x2b8] sm:$0xff]
      %v913 = vld [vmem:[%s1 + $0x2c0] sm:$0xff]
      %v914 = vld [vmem:[%s1 + $0x2c8] sm:$0xff]
      %v915 = vld [vmem:[%s1 + $0x2d0] sm:$0xff]
      %v916 = vld [vmem:[%s1 + $0x2d8] sm:$0xff]
      %v917 = vld [vmem:[%s1 + $0x2e0] sm:$0xff]
      %v918 = vld [vmem:[%s1 + $0x2e8] sm:$0xff]
      %v919 = vld [vmem:[%s1 + $0x2f0] sm:$0xff]
      %v920 = vld [vmem:[%s1 + $0x2f8] sm:$0xff]
      %921 = vmatpush.msra.mxu0 %v920
      %922 = vmatpush.msra.mxu0 %v919
      %923 = vmatpush.msra.mxu0 %v918
      %924 = vmatpush.msra.mxu0 %v917
      %925 = vmatpush.msra.mxu0 %v916
      %926 = vmatpush.msra.mxu0 %v915
      %927 = vmatpush.msra.mxu0 %v914
      %928 = vmatpush.msra.mxu0 %v913
      %929 = vmatpush.msra.mxu0 %v912
      %930 = vmatpush.msra.mxu0 %v911
      %931 = vmatpush.msra.mxu0 %v910
      %932 = vmatpush.msra.mxu0 %v909
      %933 = vmatpush.msra.mxu0 %v908
      %934 = vmatpush.msra.mxu0 %v907
      %935 = vmatpush.msra.mxu0 %v906
      %936 = vmatpush.msra.mxu0 %v905
      %937 = vmatmul.f32.gmra.mxu0 %v548
      %v938 = vpop.f32.mrf.mxu0
      %v939 = vadd.f32 0.0, %v938
      %940 = vmatmul.f32.gmra.mxu0 %v550
      %v941 = vpop.f32.mrf.mxu0
      %v942 = vadd.f32 0.0, %v941
      %943 = vmatmul.f32.gmra.mxu0 %v553
      %v944 = vpop.f32.mrf.mxu0
      %v945 = vadd.f32 0.0, %v944
      %946 = vmatmul.f32.gmra.mxu0 %v555
      %v947 = vpop.f32.mrf.mxu0
      %v948 = vadd.f32 0.0, %v947
      %949 = vmatmul.f32.gmra.mxu0 %v558
      %v950 = vpop.f32.mrf.mxu0
      %v951 = vadd.f32 0.0, %v950
      %952 = vmatmul.f32.gmra.mxu0 %v560
      %v953 = vpop.f32.mrf.mxu0
      %v954 = vadd.f32 0.0, %v953
      %955 = vmatmul.f32.gmra.mxu0 %v563
      %v956 = vpop.f32.mrf.mxu0
      %v957 = vadd.f32 0.0, %v956
      %958 = vmatmul.f32.gmra.mxu0 %v565
      %v959 = vpop.f32.mrf.mxu0
      %v960 = vadd.f32 0.0, %v959
      %961 = vmatmul.f32.gmra.mxu0 %v568
      %v962 = vpop.f32.mrf.mxu0
      %v963 = vadd.f32 0.0, %v962
      %964 = vmatmul.f32.gmra.mxu0 %v570
      %v965 = vpop.f32.mrf.mxu0
      %v966 = vadd.f32 0.0, %v965
      %967 = vmatmul.f32.gmra.mxu0 %v573
      %v968 = vpop.f32.mrf.mxu0
      %v969 = vadd.f32 0.0, %v968
      %970 = vmatmul.f32.gmra.mxu0 %v575
      %v971 = vpop.f32.mrf.mxu0
      %v972 = vadd.f32 0.0, %v971
      %973 = vmatmul.f32.gmra.mxu0 %v578
      %v974 = vpop.f32.mrf.mxu0
      %v975 = vadd.f32 0.0, %v974
      %976 = vmatmul.f32.gmra.mxu0 %v580
      %v977 = vpop.f32.mrf.mxu0
      %v978 = vadd.f32 0.0, %v977
      %979 = vmatmul.f32.gmra.mxu0 %v900
      %v980 = vpop.f32.mrf.mxu0
      %v981 = vadd.f32 0.0, %v980
      %982 = vmatmul.f32.gmra.mxu0 %v902
      %v983 = vpop.f32.mrf.mxu0
      %v984 = vadd.f32 0.0, %v983
      %985 = vdwg.mxu0
      %v986 = vadd.f32 %v882, %v939
      %v987 = vadd.f32 %v883, %v942
      %v988 = vadd.f32 %v884, %v945
      %v989 = vadd.f32 %v885, %v948
      %v990 = vadd.f32 %v886, %v951
      %v991 = vadd.f32 %v887, %v954
      %v992 = vadd.f32 %v888, %v957
      %v993 = vadd.f32 %v889, %v960
      %v994 = vadd.f32 %v890, %v963
      %v995 = vadd.f32 %v891, %v966
      %v996 = vadd.f32 %v892, %v969
      %v997 = vadd.f32 %v893, %v972
      %v998 = vadd.f32 %v894, %v975
      %v999 = vadd.f32 %v895, %v978
      %v1000 = vadd.f32 %v896, %v981
      %v1001 = vadd.f32 %v897, %v984
      %v1002 = vld [vmem:[%s1 + $0x300] sm:$0xff]
      %v1003 = vld [vmem:[%s1 + $0x308] sm:$0xff]
      %v1004 = vld [vmem:[%s1 + $0x310] sm:$0xff]
      %v1005 = vld [vmem:[%s1 + $0x318] sm:$0xff]
      %v1006 = vld [vmem:[%s1 + $0x320] sm:$0xff]
      %v1007 = vld [vmem:[%s1 + $0x328] sm:$0xff]
      %v1008 = vld [vmem:[%s1 + $0x330] sm:$0xff]
      %v1009 = vld [vmem:[%s1 + $0x338] sm:$0xff]
      %v1010 = vld [vmem:[%s1 + $0x340] sm:$0xff]
      %v1011 = vld [vmem:[%s1 + $0x348] sm:$0xff]
      %v1012 = vld [vmem:[%s1 + $0x350] sm:$0xff]
      %v1013 = vld [vmem:[%s1 + $0x358] sm:$0xff]
      %v1014 = vld [vmem:[%s1 + $0x360] sm:$0xff]
      %v1015 = vld [vmem:[%s1 + $0x368] sm:$0xff]
      %v1016 = vld [vmem:[%s1 + $0x370] sm:$0xff]
      %v1017 = vld [vmem:[%s1 + $0x378] sm:$0xff]
      %1018 = vmatpush.msra.mxu0 %v1017
      %1019 = vmatpush.msra.mxu0 %v1016
      %1020 = vmatpush.msra.mxu0 %v1015
      %1021 = vmatpush.msra.mxu0 %v1014
      %1022 = vmatpush.msra.mxu0 %v1013
      %1023 = vmatpush.msra.mxu0 %v1012
      %1024 = vmatpush.msra.mxu0 %v1011
      %1025 = vmatpush.msra.mxu0 %v1010
      %1026 = vmatpush.msra.mxu0 %v1009
      %1027 = vmatpush.msra.mxu0 %v1008
      %1028 = vmatpush.msra.mxu0 %v1007
      %1029 = vmatpush.msra.mxu0 %v1006
      %1030 = vmatpush.msra.mxu0 %v1005
      %1031 = vmatpush.msra.mxu0 %v1004
      %1032 = vmatpush.msra.mxu0 %v1003
      %1033 = vmatpush.msra.mxu0 %v1002
      %1034 = vmatmul.f32.gmra.mxu0 %v273
      %v1035 = vpop.f32.mrf.mxu0
      %v1036 = vadd.f32 0.0, %v1035
      %1037 = vmatmul.f32.gmra.mxu0 %v274
      %v1038 = vpop.f32.mrf.mxu0
      %v1039 = vadd.f32 0.0, %v1038
      %1040 = vmatmul.f32.gmra.mxu0 %v276
      %v1041 = vpop.f32.mrf.mxu0
      %v1042 = vadd.f32 0.0, %v1041
      %1043 = vmatmul.f32.gmra.mxu0 %v277
      %v1044 = vpop.f32.mrf.mxu0
      %v1045 = vadd.f32 0.0, %v1044
      %1046 = vmatmul.f32.gmra.mxu0 %v279
      %v1047 = vpop.f32.mrf.mxu0
      %v1048 = vadd.f32 0.0, %v1047
      %1049 = vmatmul.f32.gmra.mxu0 %v280
      %v1050 = vpop.f32.mrf.mxu0
      %v1051 = vadd.f32 0.0, %v1050
      %1052 = vmatmul.f32.gmra.mxu0 %v282
      %v1053 = vpop.f32.mrf.mxu0
      %v1054 = vadd.f32 0.0, %v1053
      %1055 = vmatmul.f32.gmra.mxu0 %v283
      %v1056 = vpop.f32.mrf.mxu0
      %v1057 = vadd.f32 0.0, %v1056
      %1058 = vmatmul.f32.gmra.mxu0 %v285
      %v1059 = vpop.f32.mrf.mxu0
      %v1060 = vadd.f32 0.0, %v1059
      %1061 = vmatmul.f32.gmra.mxu0 %v286
      %v1062 = vpop.f32.mrf.mxu0
      %v1063 = vadd.f32 0.0, %v1062
      %1064 = vmatmul.f32.gmra.mxu0 %v288
      %v1065 = vpop.f32.mrf.mxu0
      %v1066 = vadd.f32 0.0, %v1065
      %1067 = vmatmul.f32.gmra.mxu0 %v289
      %v1068 = vpop.f32.mrf.mxu0
      %v1069 = vadd.f32 0.0, %v1068
      %1070 = vmatmul.f32.gmra.mxu0 %v291
      %v1071 = vpop.f32.mrf.mxu0
      %v1072 = vadd.f32 0.0, %v1071
      %1073 = vmatmul.f32.gmra.mxu0 %v292
      %v1074 = vpop.f32.mrf.mxu0
      %v1075 = vadd.f32 0.0, %v1074
      %1076 = vmatmul.f32.gmra.mxu0 %v294
      %v1077 = vpop.f32.mrf.mxu0
      %v1078 = vadd.f32 0.0, %v1077
      %1079 = vmatmul.f32.gmra.mxu0 %v295
      %v1080 = vpop.f32.mrf.mxu0
      %v1081 = vadd.f32 0.0, %v1080
      %1082 = vdwg.mxu0
      %v1083 = vadd.f32 %v986, %v1036
      %v1084 = vadd.f32 %v987, %v1039
      %v1085 = vadd.f32 %v988, %v1042
      %v1086 = vadd.f32 %v989, %v1045
      %v1087 = vadd.f32 %v990, %v1048
      %v1088 = vadd.f32 %v991, %v1051
      %v1089 = vadd.f32 %v992, %v1054
      %v1090 = vadd.f32 %v993, %v1057
      %v1091 = vadd.f32 %v994, %v1060
      %v1092 = vadd.f32 %v995, %v1063
      %v1093 = vadd.f32 %v996, %v1066
      %v1094 = vadd.f32 %v997, %v1069
      %v1095 = vadd.f32 %v998, %v1072
      %v1096 = vadd.f32 %v999, %v1075
      %v1097 = vadd.f32 %v1000, %v1078
      %v1098 = vadd.f32 %v1001, %v1081
      %v1102 = vrot.slane %v294, 1
      %v1103 = vrot.slane %v295, 1
      %v1104 = vsel %vm337, %v1102, %v1103
      %v1105 = vrot.slane %v296, 1
      %v1106 = vsel %vm337, %v1103, %v1105
      %v1109 = vld [vmem:[%s1 + $0x380] sm:$0xff]
      %v1110 = vld [vmem:[%s1 + $0x388] sm:$0xff]
      %v1111 = vld [vmem:[%s1 + $0x390] sm:$0xff]
      %v1112 = vld [vmem:[%s1 + $0x398] sm:$0xff]
      %v1113 = vld [vmem:[%s1 + $0x3a0] sm:$0xff]
      %v1114 = vld [vmem:[%s1 + $0x3a8] sm:$0xff]
      %v1115 = vld [vmem:[%s1 + $0x3b0] sm:$0xff]
      %v1116 = vld [vmem:[%s1 + $0x3b8] sm:$0xff]
      %v1117 = vld [vmem:[%s1 + $0x3c0] sm:$0xff]
      %v1118 = vld [vmem:[%s1 + $0x3c8] sm:$0xff]
      %v1119 = vld [vmem:[%s1 + $0x3d0] sm:$0xff]
      %v1120 = vld [vmem:[%s1 + $0x3d8] sm:$0xff]
      %v1121 = vld [vmem:[%s1 + $0x3e0] sm:$0xff]
      %v1122 = vld [vmem:[%s1 + $0x3e8] sm:$0xff]
      %v1123 = vld [vmem:[%s1 + $0x3f0] sm:$0xff]
      %v1124 = vld [vmem:[%s1 + $0x3f8] sm:$0xff]
      %1125 = vmatpush.msra.mxu0 %v1124
      %1126 = vmatpush.msra.mxu0 %v1123
      %1127 = vmatpush.msra.mxu0 %v1122
      %1128 = vmatpush.msra.mxu0 %v1121
      %1129 = vmatpush.msra.mxu0 %v1120
      %1130 = vmatpush.msra.mxu0 %v1119
      %1131 = vmatpush.msra.mxu0 %v1118
      %1132 = vmatpush.msra.mxu0 %v1117
      %1133 = vmatpush.msra.mxu0 %v1116
      %1134 = vmatpush.msra.mxu0 %v1115
      %1135 = vmatpush.msra.mxu0 %v1114
      %1136 = vmatpush.msra.mxu0 %v1113
      %1137 = vmatpush.msra.mxu0 %v1112
      %1138 = vmatpush.msra.mxu0 %v1111
      %1139 = vmatpush.msra.mxu0 %v1110
      %1140 = vmatpush.msra.mxu0 %v1109
      %1141 = vmatmul.f32.gmra.mxu0 %v350
      %v1142 = vpop.f32.mrf.mxu0
      %v1143 = vadd.f32 0.0, %v1142
      %1144 = vmatmul.f32.gmra.mxu0 %v352
      %v1145 = vpop.f32.mrf.mxu0
      %v1146 = vadd.f32 0.0, %v1145
      %1147 = vmatmul.f32.gmra.mxu0 %v355
      %v1148 = vpop.f32.mrf.mxu0
      %v1149 = vadd.f32 0.0, %v1148
      %1150 = vmatmul.f32.gmra.mxu0 %v357
      %v1151 = vpop.f32.mrf.mxu0
      %v1152 = vadd.f32 0.0, %v1151
      %1153 = vmatmul.f32.gmra.mxu0 %v360
      %v1154 = vpop.f32.mrf.mxu0
      %v1155 = vadd.f32 0.0, %v1154
      %1156 = vmatmul.f32.gmra.mxu0 %v362
      %v1157 = vpop.f32.mrf.mxu0
      %v1158 = vadd.f32 0.0, %v1157
      %1159 = vmatmul.f32.gmra.mxu0 %v365
      %v1160 = vpop.f32.mrf.mxu0
      %v1161 = vadd.f32 0.0, %v1160
      %1162 = vmatmul.f32.gmra.mxu0 %v367
      %v1163 = vpop.f32.mrf.mxu0
      %v1164 = vadd.f32 0.0, %v1163
      %1165 = vmatmul.f32.gmra.mxu0 %v370
      %v1166 = vpop.f32.mrf.mxu0
      %v1167 = vadd.f32 0.0, %v1166
      %1168 = vmatmul.f32.gmra.mxu0 %v372
      %v1169 = vpop.f32.mrf.mxu0
      %v1170 = vadd.f32 0.0, %v1169
      %1171 = vmatmul.f32.gmra.mxu0 %v375
      %v1172 = vpop.f32.mrf.mxu0
      %v1173 = vadd.f32 0.0, %v1172
      %1174 = vmatmul.f32.gmra.mxu0 %v377
      %v1175 = vpop.f32.mrf.mxu0
      %v1176 = vadd.f32 0.0, %v1175
      %1177 = vmatmul.f32.gmra.mxu0 %v796
      %v1178 = vpop.f32.mrf.mxu0
      %v1179 = vadd.f32 0.0, %v1178
      %1180 = vmatmul.f32.gmra.mxu0 %v798
      %v1181 = vpop.f32.mrf.mxu0
      %v1182 = vadd.f32 0.0, %v1181
      %1183 = vmatmul.f32.gmra.mxu0 %v1104
      %v1184 = vpop.f32.mrf.mxu0
      %v1185 = vadd.f32 0.0, %v1184
      %1186 = vmatmul.f32.gmra.mxu0 %v1106
      %v1187 = vpop.f32.mrf.mxu0
      %v1188 = vadd.f32 0.0, %v1187
      %1189 = vdwg.mxu0
      %v1190 = vadd.f32 %v1083, %v1143
      %v1191 = vadd.f32 %v1084, %v1146
      %v1192 = vadd.f32 %v1085, %v1149
      %v1193 = vadd.f32 %v1086, %v1152
      %v1194 = vadd.f32 %v1087, %v1155
      %v1195 = vadd.f32 %v1088, %v1158
      %v1196 = vadd.f32 %v1089, %v1161
      %v1197 = vadd.f32 %v1090, %v1164
      %v1198 = vadd.f32 %v1091, %v1167
      %v1199 = vadd.f32 %v1092, %v1170
      %v1200 = vadd.f32 %v1093, %v1173
      %v1201 = vadd.f32 %v1094, %v1176
      %v1202 = vadd.f32 %v1095, %v1179
      %v1203 = vadd.f32 %v1096, %v1182
      %v1204 = vadd.f32 %v1097, %v1185
      %v1205 = vadd.f32 %v1098, %v1188
      %v1206 = vrot.slane %v294, 2
      %v1207 = vrot.slane %v295, 2
      %v1208 = vsel %vm540, %v1206, %v1207
      %v1209 = vrot.slane %v296, 2
      %v1210 = vsel %vm540, %v1207, %v1209
      %v1213 = vld [vmem:[%s1 + $0x400] sm:$0xff]
      %v1214 = vld [vmem:[%s1 + $0x408] sm:$0xff]
      %v1215 = vld [vmem:[%s1 + $0x410] sm:$0xff]
      %v1216 = vld [vmem:[%s1 + $0x418] sm:$0xff]
      %v1217 = vld [vmem:[%s1 + $0x420] sm:$0xff]
      %v1218 = vld [vmem:[%s1 + $0x428] sm:$0xff]
      %v1219 = vld [vmem:[%s1 + $0x430] sm:$0xff]
      %v1220 = vld [vmem:[%s1 + $0x438] sm:$0xff]
      %v1221 = vld [vmem:[%s1 + $0x440] sm:$0xff]
      %v1222 = vld [vmem:[%s1 + $0x448] sm:$0xff]
      %v1223 = vld [vmem:[%s1 + $0x450] sm:$0xff]
      %v1224 = vld [vmem:[%s1 + $0x458] sm:$0xff]
      %v1225 = vld [vmem:[%s1 + $0x460] sm:$0xff]
      %v1226 = vld [vmem:[%s1 + $0x468] sm:$0xff]
      %v1227 = vld [vmem:[%s1 + $0x470] sm:$0xff]
      %v1228 = vld [vmem:[%s1 + $0x478] sm:$0xff]
      %1229 = vmatpush.msra.mxu0 %v1228
      %1230 = vmatpush.msra.mxu0 %v1227
      %1231 = vmatpush.msra.mxu0 %v1226
      %1232 = vmatpush.msra.mxu0 %v1225
      %1233 = vmatpush.msra.mxu0 %v1224
      %1234 = vmatpush.msra.mxu0 %v1223
      %1235 = vmatpush.msra.mxu0 %v1222
      %1236 = vmatpush.msra.mxu0 %v1221
      %1237 = vmatpush.msra.mxu0 %v1220
      %1238 = vmatpush.msra.mxu0 %v1219
      %1239 = vmatpush.msra.mxu0 %v1218
      %1240 = vmatpush.msra.mxu0 %v1217
      %1241 = vmatpush.msra.mxu0 %v1216
      %1242 = vmatpush.msra.mxu0 %v1215
      %1243 = vmatpush.msra.mxu0 %v1214
      %1244 = vmatpush.msra.mxu0 %v1213
      %1245 = vmatmul.f32.gmra.mxu0 %v553
      %v1246 = vpop.f32.mrf.mxu0
      %v1247 = vadd.f32 0.0, %v1246
      %1248 = vmatmul.f32.gmra.mxu0 %v555
      %v1249 = vpop.f32.mrf.mxu0
      %v1250 = vadd.f32 0.0, %v1249
      %1251 = vmatmul.f32.gmra.mxu0 %v558
      %v1252 = vpop.f32.mrf.mxu0
      %v1253 = vadd.f32 0.0, %v1252
      %1254 = vmatmul.f32.gmra.mxu0 %v560
      %v1255 = vpop.f32.mrf.mxu0
      %v1256 = vadd.f32 0.0, %v1255
      %1257 = vmatmul.f32.gmra.mxu0 %v563
      %v1258 = vpop.f32.mrf.mxu0
      %v1259 = vadd.f32 0.0, %v1258
      %1260 = vmatmul.f32.gmra.mxu0 %v565
      %v1261 = vpop.f32.mrf.mxu0
      %v1262 = vadd.f32 0.0, %v1261
      %1263 = vmatmul.f32.gmra.mxu0 %v568
      %v1264 = vpop.f32.mrf.mxu0
      %v1265 = vadd.f32 0.0, %v1264
      %1266 = vmatmul.f32.gmra.mxu0 %v570
      %v1267 = vpop.f32.mrf.mxu0
      %v1268 = vadd.f32 0.0, %v1267
      %1269 = vmatmul.f32.gmra.mxu0 %v573
      %v1270 = vpop.f32.mrf.mxu0
      %v1271 = vadd.f32 0.0, %v1270
      %1272 = vmatmul.f32.gmra.mxu0 %v575
      %v1273 = vpop.f32.mrf.mxu0
      %v1274 = vadd.f32 0.0, %v1273
      %1275 = vmatmul.f32.gmra.mxu0 %v578
      %v1276 = vpop.f32.mrf.mxu0
      %v1277 = vadd.f32 0.0, %v1276
      %1278 = vmatmul.f32.gmra.mxu0 %v580
      %v1279 = vpop.f32.mrf.mxu0
      %v1280 = vadd.f32 0.0, %v1279
      %1281 = vmatmul.f32.gmra.mxu0 %v900
      %v1282 = vpop.f32.mrf.mxu0
      %v1283 = vadd.f32 0.0, %v1282
      %1284 = vmatmul.f32.gmra.mxu0 %v902
      %v1285 = vpop.f32.mrf.mxu0
      %v1286 = vadd.f32 0.0, %v1285
      %1287 = vmatmul.f32.gmra.mxu0 %v1208
      %v1288 = vpop.f32.mrf.mxu0
      %v1289 = vadd.f32 0.0, %v1288
      %1290 = vmatmul.f32.gmra.mxu0 %v1210
      %v1291 = vpop.f32.mrf.mxu0
      %v1292 = vadd.f32 0.0, %v1291
      %1293 = vdwg.mxu0
      %v1294 = vadd.f32 %v1190, %v1247
      %v1295 = vadd.f32 %v1191, %v1250
      %v1296 = vadd.f32 %v1192, %v1253
      %v1297 = vadd.f32 %v1193, %v1256
      %v1298 = vadd.f32 %v1194, %v1259
      %v1299 = vadd.f32 %v1195, %v1262
      %v1300 = vadd.f32 %v1196, %v1265
      %v1301 = vadd.f32 %v1197, %v1268
      %v1302 = vadd.f32 %v1198, %v1271
      %v1303 = vadd.f32 %v1199, %v1274
      %v1304 = vadd.f32 %v1200, %v1277
      %v1305 = vadd.f32 %v1201, %v1280
      %v1306 = vadd.f32 %v1202, %v1283
      %v1307 = vadd.f32 %v1203, %v1286
      %v1308 = vadd.f32 %v1204, %v1289
      %v1309 = vadd.f32 %v1205, %v1292
      %1310 = vst [vmem:[%s246] sm:$0xff] %v1294
      %1311 = vst [vmem:[%s246 + $0x8] sm:$0xff] %v1295
      %1312 = vst [vmem:[%s246 + $0x10] sm:$0xff] %v1296
      %1313 = vst [vmem:[%s246 + $0x18] sm:$0xff] %v1297
      %1314 = vst [vmem:[%s246 + $0x20] sm:$0xff] %v1298
      %1315 = vst [vmem:[%s246 + $0x28] sm:$0xff] %v1299
      %1316 = vst [vmem:[%s246 + $0x30] sm:$0xff] %v1300
      %1317 = vst [vmem:[%s246 + $0x38] sm:$0xff] %v1301
      %1318 = vst [vmem:[%s246 + $0x40] sm:$0xff] %v1302
      %1319 = vst [vmem:[%s246 + $0x48] sm:$0xff] %v1303
      %1320 = vst [vmem:[%s246 + $0x50] sm:$0xff] %v1304
      %1321 = vst [vmem:[%s246 + $0x58] sm:$0xff] %v1305
      %1322 = vst [vmem:[%s246 + $0x60] sm:$0xff] %v1306
      %1323 = vst [vmem:[%s246 + $0x68] sm:$0xff] %v1307
      %1324 = vst [vmem:[%s246 + $0x70] sm:$0xff] %v1308
      %1325 = vst [vmem:[%s246 + $0x78] sm:$0xff] %v1309
      %v1326 = vadd.f32 %v1294, %v1295
      %v1327 = vadd.f32 %v1326, %v1296
      %v1328 = vadd.f32 %v1327, %v1297
      %v1329 = vadd.f32 %v1328, %v1298
      %v1330 = vadd.f32 %v1329, %v1299
      %v1331 = vadd.f32 %v1330, %v1300
      %v1332 = vadd.f32 %v1331, %v1301
      %v1333 = vadd.f32 %v1332, %v1302
      %v1334 = vadd.f32 %v1333, %v1303
      %v1335 = vadd.f32 %v1334, %v1304
      %v1336 = vadd.f32 %v1335, %v1305
      %v1337 = vadd.f32 %v1336, %v1306
      %v1338 = vadd.f32 %v1337, %v1307
      %v1339 = vadd.f32 %v1338, %v1308
      %v1340 = vadd.f32 %v1339, %v1309
      %v1341 = vrot.slane %v1340, 4
      %v1342 = vadd.f32 %v1340, %v1341
      %v1343 = vrot.slane %v1342, 2
      %v1344 = vadd.f32 %v1342, %v1343
      %v1345 = vrot.slane %v1344, 1
      %v1346 = vadd.f32 %v1344, %v1345
      %v1347 = vmul.f32 %v1294, %v1294
      %v1348 = vmul.f32 %v1295, %v1295
      %v1349 = vmul.f32 %v1296, %v1296
      %v1350 = vmul.f32 %v1297, %v1297
      %v1351 = vmul.f32 %v1298, %v1298
      %v1352 = vmul.f32 %v1299, %v1299
      %v1353 = vmul.f32 %v1300, %v1300
      %v1354 = vmul.f32 %v1301, %v1301
      %v1355 = vmul.f32 %v1302, %v1302
      %v1356 = vmul.f32 %v1303, %v1303
      %v1357 = vmul.f32 %v1304, %v1304
      %v1358 = vmul.f32 %v1305, %v1305
      %v1359 = vmul.f32 %v1306, %v1306
      %v1360 = vmul.f32 %v1307, %v1307
      %v1361 = vmul.f32 %v1308, %v1308
      %v1362 = vmul.f32 %v1309, %v1309
      %v1363 = vadd.f32 %v1347, %v1348
      %v1364 = vadd.f32 %v1363, %v1349
      %v1365 = vadd.f32 %v1364, %v1350
      %v1366 = vadd.f32 %v1365, %v1351
      %v1367 = vadd.f32 %v1366, %v1352
      %v1368 = vadd.f32 %v1367, %v1353
      %v1369 = vadd.f32 %v1368, %v1354
      %v1370 = vadd.f32 %v1369, %v1355
      %v1371 = vadd.f32 %v1370, %v1356
      %v1372 = vadd.f32 %v1371, %v1357
      %v1373 = vadd.f32 %v1372, %v1358
      %v1374 = vadd.f32 %v1373, %v1359
      %v1375 = vadd.f32 %v1374, %v1360
      %v1376 = vadd.f32 %v1375, %v1361
      %v1377 = vadd.f32 %v1376, %v1362
      %v1378 = vrot.slane %v1377, 4
      %v1379 = vadd.f32 %v1377, %v1378
      %v1380 = vrot.slane %v1379, 2
      %v1381 = vadd.f32 %v1379, %v1380
      %v1382 = vrot.slane %v1381, 1
      %v1383 = vadd.f32 %v1381, %v1382
      %1384 = vst [vmem:[%s255] sm:$0xff] %v1346
      %1385 = vst [vmem:[%s263] sm:$0xff] %v1383
      %s1386 = smul.u32 8, %s21
      %p1387 = scmp.lt.s32.totalorder %s20, 1
      %s1388 = scalar_select %p1387, %s20, 1
      %p1389 = scmp.lt.s32.totalorder %s1386, 15
      %s1390 = scalar_select %p1389, %s1386, 15
      %s1391 = smul.addr %s1390, 2
      %s1392 = smul.addr %s1388, 32
      %s1393 = sadd.s32 %s1391, %s1392
      %s1394 = smul.addr %s1393, 8
      %s1395 = scalar_lea.vmem %s2, %s1394
      %p1396 = scmp.lt.s32.totalorder %s20, 1
      %s1397 = scalar_select %p1396, %s20, 1
      %p1398 = scmp.lt.s32.totalorder %s21, 1
      %s1399 = scalar_select %p1398, %s21, 1
      %s1400 = smul.addr %s1397, 2
      %s1401 = sadd.s32 %s1399, %s1400
      %s1402 = smul.addr %s1401, 8
      %s1403 = scalar_lea.vmem %s3, %s1402
      %p1404 = scmp.lt.s32.totalorder %s20, 1
      %s1405 = scalar_select %p1404, %s20, 1
      %p1406 = scmp.lt.s32.totalorder %s21, 1
      %s1407 = scalar_select %p1406, %s21, 1
      %s1408 = smul.addr %s1405, 2
      %s1409 = sadd.s32 %s1407, %s1408
      %s1410 = smul.addr %s1409, 8
      %s1411 = scalar_lea.vmem %s4, %s1410
      // Predicated region
      $region29: #{encoding_block_forward.4} parent=27 // pred_check
        %p1412 = pneg %p95
      $region30: #{encoding_block_forward.4} parent=27 // pred_check_branch
        %1414 = sbr.rel (%p1412) target = $region32
      $region31: #{encoding_block_forward.4} parent=27 // pred_region
        %s1415 = smul.u32 8, %s21
      $region32: #{encoding_block_forward.4} parent=27 // pred_fallthru
        _
      // Predicated region
      $region33: #{encoding_block_forward.4} parent=27 // pred_check
        %p1416 = pneg %p123
      $region34: #{encoding_block_forward.4} parent=27 // pred_check_branch
        %1418 = sbr.rel (%p1416) target = $region36
      $region35: #{encoding_block_forward.4} parent=27 // pred_region
        _
      $region36: #{encoding_block_forward.4} parent=27 // pred_fallthru
        _
      // Predicated region
      $region37: #{encoding_block_forward.4} parent=27 // pred_check
        %p1419 = pneg %p151
      $region38: #{encoding_block_forward.4} parent=27 // pred_check_branch
        %1421 = sbr.rel (%p1419) target = $region40
      $region39: #{encoding_block_forward.4} parent=27 // pred_region
        _
      $region40: #{encoding_block_forward.4} parent=27 // pred_fallthru
        _
    $region28: #{encoding_block_forward.4} parent=5 // pred_fallthru
      _
    %p1422 = scmp.le.s32.totalorder 2, %s11
    // Predicated region
    $region41: #{encoding_block_forward.4} parent=5 // pred_check
      %p1423 = pneg %p1422
    $region42: #{encoding_block_forward.4} parent=5 // pred_check_branch
      %1425 = sbr.rel (%p1423) target = $region44
    $region43: #{encoding_block_forward.4} parent=5 // pred_region
      %s1426 = ssub.s32 %s11, 2
      // Predicated region
      $region45: #{encoding_block_forward.4} parent=43 // pred_check
        %p1427 = pneg %p101
      $region46: #{encoding_block_forward.4} parent=43 // pred_check_branch
        %1429 = sbr.rel (%p1427) target = $region48
      $region47: #{encoding_block_forward.4} parent=43 // pred_region
        %s1430 = smul.u32 8, %s23
        %p1431 = scmp.lt.s32.totalorder %s22, 1
        %s1432 = scalar_select %p1431, %s22, 1
        %p1433 = scmp.lt.s32.totalorder %s1430, 15
        %s1434 = scalar_select %p1433, %s1430, 15
        %s1435 = smul.addr %s1434, 2
        %s1436 = smul.addr %s1432, 32
        %s1437 = sadd.s32 %s1435, %s1436
        %s1438 = smul.addr %s1437, 8
        %s1439 = scalar_lea.vmem %s2, %s1438
      $region48: #{encoding_block_forward.4} parent=43 // pred_fallthru
        _
      // Predicated region
      $region49: #{encoding_block_forward.4} parent=43 // pred_check
        %p1440 = pneg %p129
      $region50: #{encoding_block_forward.4} parent=43 // pred_check_branch
        %1442 = sbr.rel (%p1440) target = $region52
      $region51: #{encoding_block_forward.4} parent=43 // pred_region
        %p1443 = scmp.lt.s32.totalorder %s22, 1
        %s1444 = scalar_select %p1443, %s22, 1
        %p1445 = scmp.lt.s32.totalorder %s23, 1
        %s1446 = scalar_select %p1445, %s23, 1
        %s1447 = smul.addr %s1444, 2
        %s1448 = sadd.s32 %s1446, %s1447
        %s1449 = smul.addr %s1448, 8
        %s1450 = scalar_lea.vmem %s3, %s1449
      $region52: #{encoding_block_forward.4} parent=43 // pred_fallthru
        _
      // Predicated region
      $region53: #{encoding_block_forward.4} parent=43 // pred_check
        %p1451 = pneg %p157
      $region54: #{encoding_block_forward.4} parent=43 // pred_check_branch
        %1453 = sbr.rel (%p1451) target = $region56
      $region55: #{encoding_block_forward.4} parent=43 // pred_region
        %p1454 = scmp.lt.s32.totalorder %s22, 1
        %s1455 = scalar_select %p1454, %s22, 1
        %p1456 = scmp.lt.s32.totalorder %s23, 1
        %s1457 = scalar_select %p1456, %s23, 1
        %s1458 = smul.addr %s1455, 2
        %s1459 = sadd.s32 %s1457, %s1458
        %s1460 = smul.addr %s1459, 8
        %s1461 = scalar_lea.vmem %s4, %s1460
      $region56: #{encoding_block_forward.4} parent=43 // pred_fallthru
        _
    $region44: #{encoding_block_forward.4} parent=5 // pred_fallthru
      _
  $region6: #{encoding_block_forward.4} parent=0 // loop_footer
    %s15 = sadd.s32 1, %s11
  $region7: #{encoding_block_forward.4} parent=0 // loop_footer_branch
    %10 = sbr.rel target = $region3
  $region8: #{encoding_block_forward.4} parent=0 // loop_exit
    _

</llo_original>
